<compile_context>
chip_gen: v6e
topology: v6e:2x2x1
jax: 0.10.0
libtpu: 0.0.40
codegen_flags: <defaults>
</compile_context>

<pallas_src>
import math

import jax
import jax.numpy as jnp
from jax import lax
from jax.experimental import pallas as pl
from jax.experimental.pallas import tpu as pltpu

LANE = 128
_LOG_2PI = math.log(2.0 * math.pi)

# In-kernel normal sampling needs the stateful TPU PRNG helpers; fall back to a
# wrapper-provided eps input if this JAX build does not expose them.
_HAS_TPU_PRNG = hasattr(pltpu, "prng_seed") and hasattr(pltpu, "stateful_normal")


def _round_up(x, m):
    return (x + m - 1) // m * m


def _make_kernel(*, TB, A, E_pad, A_pad, use_prng):
    """Build the fused actor-MLP + rsample + log_prob kernel."""
    off_b1 = 0
    off_b2 = E_pad
    off_b3 = 2 * E_pad
    off_ls = 2 * E_pad + A_pad

    def body(state_ref, w1_ref, w2_ref, w3_ref, pack_ref, eps, action_ref, logp_ref):
        x = state_ref[...]                                   # (TB, S_pad) f32
        b1 = pack_ref[:, off_b1:off_b1 + E_pad]              # (1, E_pad) f32
        b2 = pack_ref[:, off_b2:off_b2 + E_pad]              # (1, E_pad) f32
        b3 = pack_ref[:, off_b3:off_b3 + A_pad]              # (1, A_pad) f32
        log_std = pack_ref[:, off_ls:off_ls + A_pad]         # (1, A_pad) f32 (pad lanes = 0)

        # Actor MLP: Linear -> ReLU -> Linear -> ReLU -> Linear -> Tanh.
        # bf16 operands feed the MXU; accumulation and elementwise math stay f32.
        h1 = jnp.dot(x.astype(jnp.bfloat16), w1_ref[...],
                     preferred_element_type=jnp.float32) + b1
        h1 = jnp.maximum(h1, 0.0)
        h2 = jnp.dot(h1.astype(jnp.bfloat16), w2_ref[...],
                     preferred_element_type=jnp.float32) + b2
        h2 = jnp.maximum(h2, 0.0)
        mean = jnp.tanh(jnp.dot(h2.astype(jnp.bfloat16), w3_ref[...],
                                preferred_element_type=jnp.float32) + b3)

        # Zero eps on padded action lanes so they never touch log_prob.
        if A != A_pad:
            lane_idx = lax.broadcasted_iota(jnp.int32, (TB, A_pad), 1)
            eps = jnp.where(lane_idx < A, eps, 0.0)

        std = jnp.exp(log_std)                               # (1, A_pad)
        action_ref[...] = mean + std * eps                   # rsample

        # Normal(mean, std).log_prob(action).sum(-1, keepdim=True):
        # (action - mean)/std == eps exactly, so use eps directly; the
        # batch-independent constant is folded out of the vector path
        # (padded log_std lanes are 0 and do not perturb the sum).
        c = -jnp.sum(log_std) - 0.5 * A * _LOG_2PI
        logp_ref[...] = -0.5 * jnp.sum(eps * eps, axis=-1, keepdims=True) + c

    if use_prng:
        def kernel(seed_ref, state_ref, w1_ref, w2_ref, w3_ref, pack_ref,
                   action_ref, logp_ref):
            # Distinct stream per batch tile (and per TensorCore on v7x).
            pltpu.prng_seed(seed_ref[0] + pl.program_id(0) * 1000003)
            eps = pltpu.stateful_normal((TB, A_pad), jnp.float32)
            body(state_ref, w1_ref, w2_ref, w3_ref, pack_ref, eps,
                 action_ref, logp_ref)
    else:
        def kernel(state_ref, eps_ref, w1_ref, w2_ref, w3_ref, pack_ref,
                   action_ref, logp_ref):
            body(state_ref, w1_ref, w2_ref, w3_ref, pack_ref, eps_ref[...],
                 action_ref, logp_ref)

    return kernel


def init_params(key, state_dim, emb_size, action_dim):
    """PyTorch-Linear-style uniform init; weights stored (in, out)."""
    ks = jax.random.split(key, 6)

    def lin(kw, kb, fan_in, fan_out):
        bound = 1.0 / math.sqrt(fan_in)
        w = jax.random.uniform(kw, (fan_in, fan_out), jnp.float32, -bound, bound)
        b = jax.random.uniform(kb, (fan_out,), jnp.float32, -bound, bound)
        return w, b

    w1, b1 = lin(ks[0], ks[1], state_dim, emb_size)
    w2, b2 = lin(ks[2], ks[3], emb_size, emb_size)
    w3, b3 = lin(ks[4], ks[5], emb_size, action_dim)
    log_std = jnp.zeros((action_dim,), jnp.float32)           # nn.Parameter(zeros)
    return {"w1": w1, "b1": b1, "w2": w2, "b2": b2, "w3": w3, "b3": b3,
            "log_std": log_std}


def prepare_params(params, state_dim, emb_size, action_dim):
    """Pad to lane width, cast matmul weights to bf16, pack the small vectors."""
    S_pad = _round_up(state_dim, LANE)
    E_pad = _round_up(emb_size, LANE)
    A_pad = _round_up(action_dim, LANE)

    def pad_w(w, rows, cols):
        out = jnp.zeros((rows, cols), jnp.float32)
        out = out.at[:w.shape[0], :w.shape[1]].set(w)
        return out.astype(jnp.bfloat16)                       # MXU operand dtype

    def pad_row(v, n):
        v = jnp.reshape(v, (-1,))
        return jnp.zeros((1, n), jnp.float32).at[0, :v.shape[0]].set(v)

    pack = jnp.concatenate(
        [pad_row(params["b1"], E_pad), pad_row(params["b2"], E_pad),
         pad_row(params["b3"], A_pad), pad_row(params["log_std"], A_pad)],
        axis=-1)                                              # (1, 2E_pad + 2A_pad)

    return {
        "w1": pad_w(params["w1"], S_pad, E_pad),
        "w2": pad_w(params["w2"], E_pad, E_pad),
        "w3": pad_w(params["w3"], E_pad, A_pad),
        "pack": pack,
        "dims": (state_dim, emb_size, action_dim, S_pad, E_pad, A_pad),
    }


def _pallas_act(state_p, prep, seed, TB, use_prng):
    S, E, A, S_pad, E_pad, A_pad = prep["dims"]
    B_pad = state_p.shape[0]
    grid = (B_pad // TB,)
    pack_w = prep["pack"].shape[-1]

    kernel = _make_kernel(TB=TB, A=A, E_pad=E_pad, A_pad=A_pad, use_prng=use_prng)

    state_spec = pl.BlockSpec((TB, S_pad), lambda i: (i, 0))
    # Weights / packed biases stay VMEM-resident across all grid steps.
    w1_spec = pl.BlockSpec((S_pad, E_pad), lambda i: (0, 0))
    w2_spec = pl.BlockSpec((E_pad, E_pad), lambda i: (0, 0))
    w3_spec = pl.BlockSpec((E_pad, A_pad), lambda i: (0, 0))
    pack_spec = pl.BlockSpec((1, pack_w), lambda i: (0, 0))
    out_specs = (pl.BlockSpec((TB, A_pad), lambda i: (i, 0)),
                 pl.BlockSpec((TB, 1), lambda i: (i, 0)))
    out_shape = (jax.ShapeDtypeStruct((B_pad, A_pad), jnp.float32),
                 jax.ShapeDtypeStruct((B_pad, 1), jnp.float32))

    # VMEM budget: bf16 resident weights + f32 pack + double-buffered row tiles.
    resident = 2 * (S_pad * E_pad + E_pad * E_pad + E_pad * A_pad) + 4 * pack_w
    per_tile = 4 * TB * (S_pad + 2 * A_pad + LANE)
    vmem_limit = int(min(max(2 * resident + 4 * per_tile + (2 << 20), 16 << 20),
                         32 << 20))

    compiler_params = pltpu.CompilerParams(
        dimension_semantics=("parallel",),
        vmem_limit_bytes=vmem_limit,
    )

    if use_prng:
        in_specs = [pl.BlockSpec(memory_space=pltpu.MemorySpace.SMEM),
                    state_spec, w1_spec, w2_spec, w3_spec, pack_spec]
        args = (jnp.asarray([seed], jnp.int32), state_p,
                prep["w1"], prep["w2"], prep["w3"], prep["pack"])
    else:
        eps = jax.random.normal(jax.random.PRNGKey(seed), (B_pad, A_pad),
                                jnp.float32)
        in_specs = [state_spec, pl.BlockSpec((TB, A_pad), lambda i: (i, 0)),
                    w1_spec, w2_spec, w3_spec, pack_spec]
        args = (state_p, eps, prep["w1"], prep["w2"], prep["w3"], prep["pack"])

    return pl.pallas_call(
        kernel,
        grid=grid,
        in_specs=in_specs,
        out_specs=out_specs,
        out_shape=out_shape,
        compiler_params=compiler_params,
    )(*args)


def soft_q_policy_act(state, prep, seed=0, tb=None):
    """SoftQPolicy.act: returns (action (B, A), log_prob (B, 1))."""
    S, E, A, S_pad, E_pad, A_pad = prep["dims"]
    B = state.shape[0]

    TB = tb if tb is not None else min(512, _round_up(B, 8))
    TB = _round_up(min(TB, _round_up(B, 8)), 8)
    B_pad = _round_up(B, TB)

    state_p = jnp.zeros((B_pad, S_pad), jnp.float32).at[:B, :S].set(state)

    if _HAS_TPU_PRNG:
        try:
            action_p, logp_p = _pallas_act(state_p, prep, seed, TB, use_prng=True)
        except Exception:
            # In-kernel hardware PRNG not supported on this build/backend:
            # fall back to a wrapper-supplied eps input stream.
            action_p, logp_p = _pallas_act(state_p, prep, seed, TB, use_prng=False)
    else:
        action_p, logp_p = _pallas_act(state_p, prep, seed, TB, use_prng=False)

    return action_p[:B, :A], logp_p[:B]


if __name__ == "__main__":
    batch = 8
    state_dim = 16
    emb_size = 32
    action_dim = 8

    key = jax.random.PRNGKey(0)
    k_param, k_state = jax.random.split(key, 2)

    raw = init_params(k_param, state_dim, emb_size, action_dim)
    prep = prepare_params(raw, state_dim, emb_size, action_dim)
    state = jax.random.normal(k_state, (batch, state_dim), jnp.float32)

    action, log_prob = soft_q_policy_act(state, prep, seed=1234)
    jax.block_until_ready((action, log_prob))

    assert action.shape == (batch, action_dim)
    assert log_prob.shape == (batch, 1)
    assert bool(jnp.all(jnp.isfinite(action)))
    assert bool(jnp.all(jnp.isfinite(log_prob)))

    # Reference mean/std mirroring the kernel's bf16 MXU operands (f32 accumulate).
    bf16, f32 = jnp.bfloat16, jnp.float32
    h1 = jnp.maximum(jnp.dot(state.astype(bf16), raw["w1"].astype(bf16),
                             preferred_element_type=f32) + raw["b1"], 0.0)
    h2 = jnp.maximum(jnp.dot(h1.astype(bf16), raw["w2"].astype(bf16),
                             preferred_element_type=f32) + raw["b2"], 0.0)
    mean_ref = jnp.tanh(jnp.dot(h2.astype(bf16), raw["w3"].astype(bf16),
                                preferred_element_type=f32) + raw["b3"])
    std_ref = jnp.exp(raw["log_std"])

    # Recover the standard-normal draw the kernel used and verify the returned
    # log_prob equals Normal(mean, std).log_prob(action).sum(-1, keepdim=True).
    eps_rec = (action - mean_ref) / std_ref
    assert bool(jnp.all(jnp.abs(eps_rec) < 8.0)), "rsample noise not ~N(0,1)"
    logp_ref = jnp.sum(-0.5 * eps_rec * eps_rec - raw["log_std"]
                       - 0.5 * _LOG_2PI, axis=-1, keepdims=True)
    assert jnp.allclose(log_prob, logp_ref, atol=5e-3)

    # Sanity: bf16-operand mean stays close to the full-f32 module math.
    h1f = jnp.maximum(state @ raw["w1"] + raw["b1"], 0.0)
    h2f = jnp.maximum(h1f @ raw["w2"] + raw["b2"], 0.0)
    mean_f32 = jnp.tanh(h2f @ raw["w3"] + raw["b3"])
    assert jnp.allclose(mean_ref, mean_f32, atol=5e-2)

    print("KERNEL_OK")
</pallas_src>

<mosaic_0001>
module attributes {stable_mosaic.version = 11 : i64} {
  func.func @kernel(%arg0: i32, %arg1: memref<1xi32, #tpu.memory_space<smem>>, %arg2: memref<8x128xf32, #tpu.memory_space<vmem>>, %arg3: memref<128x128xbf16, #tpu.memory_space<vmem>>, %arg4: memref<128x128xbf16, #tpu.memory_space<vmem>>, %arg5: memref<128x128xbf16, #tpu.memory_space<vmem>>, %arg6: memref<1x512xf32, #tpu.memory_space<vmem>>, %arg7: memref<8x128xf32, #tpu.memory_space<vmem>>, %arg8: memref<8x1xf32, #tpu.memory_space<vmem>>) attributes {dimension_semantics = [#tpu.dimension_semantics<parallel>], iteration_bounds = array<i64: 1>, scalar_prefetch = 0 : i64, scratch_operands = 0 : i64, tpu.core_type = #tpu.core_type<tc>, window_params = [{transform_indices = @transform_0, window_bounds = array<i64: 1>}, {transform_indices = @transform_1, window_bounds = array<i64: 8, 128>}, {pipeline_mode = #tpu.pipeline_mode<synchronous>, transform_indices = @transform_2, window_bounds = array<i64: 128, 128>}, {pipeline_mode = #tpu.pipeline_mode<synchronous>, transform_indices = @transform_3, window_bounds = array<i64: 128, 128>}, {pipeline_mode = #tpu.pipeline_mode<synchronous>, transform_indices = @transform_4, window_bounds = array<i64: 128, 128>}, {pipeline_mode = #tpu.pipeline_mode<synchronous>, transform_indices = @transform_5, window_bounds = array<i64: 1, 512>}, {transform_indices = @transform_6, window_bounds = array<i64: 8, 128>}, {transform_indices = @transform_7, window_bounds = array<i64: 8, 1>}]} {
    %c0 = arith.constant 0 : index
    %0 = memref.load %arg1[%c0] : memref<1xi32, #tpu.memory_space<smem>>
    %c1000003_i32 = arith.constant 1000003 : i32
    %1 = arith.muli %arg0, %c1000003_i32 : i32
    %2 = arith.addi %0, %1 : i32
    "tpu.prng_set_seed_32"(%2) : (i32) -> ()
    %c0_i32 = arith.constant 0 : i32
    %c0_i32_0 = arith.constant 0 : i32
    %cst = arith.constant -0.99999994 : f32
    %cst_1 = arith.constant 1.000000e+00 : f32
    %3 = vector.broadcast %cst : f32 to vector<1x1xf32>
    %4 = vector.broadcast %cst_1 : f32 to vector<1x1xf32>
    %5 = "tpu.prng_random_bits"() : () -> vector<8x128xi32>
    %c9_i32 = arith.constant 9 : i32
    %6 = vector.broadcast %c9_i32 : i32 to vector<8x128xi32>
    %7 = arith.shrui %5, %6 : vector<8x128xi32>
    %c1065353216_i32 = arith.constant 1065353216 : i32
    %8 = vector.broadcast %c1065353216_i32 : i32 to vector<8x128xi32>
    %9 = arith.ori %7, %8 : vector<8x128xi32>
    %10 = tpu.bitcast %9 : vector<8x128xi32> -> vector<8x128xf32>
    %cst_2 = arith.constant 1.000000e+00 : f32
    %11 = vector.broadcast %cst_2 : f32 to vector<8x128xf32>
    %12 = arith.subf %10, %11 : vector<8x128xf32>
    %13 = arith.subf %4, %3 : vector<1x1xf32>
    %14 = vector.broadcast %13 : vector<1x1xf32> to vector<8x128xf32>
    %15 = arith.mulf %12, %14 : vector<8x128xf32>
    %16 = vector.broadcast %3 : vector<1x1xf32> to vector<8x128xf32>
    %17 = arith.addf %15, %16 : vector<8x128xf32>
    %18 = vector.broadcast %3 : vector<1x1xf32> to vector<8x128xf32>
    %19 = arith.maximumf %18, %17 : vector<8x128xf32>
    %cst_3 = arith.constant 0.000000e+00 : f32
    %20 = vector.broadcast %cst_3 : f32 to vector<8x128xf32>
    %21 = arith.subf %20, %19 : vector<8x128xf32>
    %22 = arith.mulf %19, %21 : vector<8x128xf32>
    %23 = math.log1p %22 : vector<8x128xf32>
    %cst_4 = arith.constant 0.000000e+00 : f32
    %24 = vector.broadcast %cst_4 : f32 to vector<8x128xf32>
    %25 = arith.subf %24, %23 : vector<8x128xf32>
    %cst_5 = arith.constant 5.000000e+00 : f32
    %26 = vector.broadcast %cst_5 : f32 to vector<8x128xf32>
    %27 = arith.cmpf olt, %25, %26 : vector<8x128xf32>
    %cst_6 = arith.constant 2.500000e+00 : f32
    %28 = vector.broadcast %cst_6 : f32 to vector<8x128xf32>
    %29 = arith.subf %25, %28 : vector<8x128xf32>
    %30 = math.sqrt %25 : vector<8x128xf32>
    %cst_7 = arith.constant 3.000000e+00 : f32
    %31 = vector.broadcast %cst_7 : f32 to vector<8x128xf32>
    %32 = arith.subf %30, %31 : vector<8x128xf32>
    %33 = arith.select %27, %29, %32 : vector<8x128xi1>, vector<8x128xf32>
    %cst_8 = arith.constant 2.81022636E-8 : f32
    %cst_9 = arith.constant -2.00214257E-4 : f32
    %34 = vector.broadcast %cst_8 : f32 to vector<8x128xf32>
    %35 = vector.broadcast %cst_9 : f32 to vector<8x128xf32>
    %36 = arith.select %27, %34, %35 : vector<8x128xi1>, vector<8x128xf32>
    %cst_10 = arith.constant 3.43273939E-7 : f32
    %cst_11 = arith.constant 1.00950558E-4 : f32
    %37 = vector.broadcast %cst_10 : f32 to vector<8x128xf32>
    %38 = vector.broadcast %cst_11 : f32 to vector<8x128xf32>
    %39 = arith.select %27, %37, %38 : vector<8x128xi1>, vector<8x128xf32>
    %40 = arith.mulf %36, %33 : vector<8x128xf32>
    %41 = arith.addf %39, %40 : vector<8x128xf32>
    %cst_12 = arith.constant -3.5233877E-6 : f32
    %cst_13 = arith.constant 0.00134934322 : f32
    %42 = vector.broadcast %cst_12 : f32 to vector<8x128xf32>
    %43 = vector.broadcast %cst_13 : f32 to vector<8x128xf32>
    %44 = arith.select %27, %42, %43 : vector<8x128xi1>, vector<8x128xf32>
    %45 = arith.mulf %41, %33 : vector<8x128xf32>
    %46 = arith.addf %44, %45 : vector<8x128xf32>
    %cst_14 = arith.constant -4.39150654E-6 : f32
    %cst_15 = arith.constant -0.00367342844 : f32
    %47 = vector.broadcast %cst_14 : f32 to vector<8x128xf32>
    %48 = vector.broadcast %cst_15 : f32 to vector<8x128xf32>
    %49 = arith.select %27, %47, %48 : vector<8x128xi1>, vector<8x128xf32>
    %50 = arith.mulf %46, %33 : vector<8x128xf32>
    %51 = arith.addf %49, %50 : vector<8x128xf32>
    %cst_16 = arith.constant 2.1858087E-4 : f32
    %cst_17 = arith.constant 0.00573950773 : f32
    %52 = vector.broadcast %cst_16 : f32 to vector<8x128xf32>
    %53 = vector.broadcast %cst_17 : f32 to vector<8x128xf32>
    %54 = arith.select %27, %52, %53 : vector<8x128xi1>, vector<8x128xf32>
    %55 = arith.mulf %51, %33 : vector<8x128xf32>
    %56 = arith.addf %54, %55 : vector<8x128xf32>
    %cst_18 = arith.constant -0.00125372503 : f32
    %cst_19 = arith.constant -0.0076224613 : f32
    %57 = vector.broadcast %cst_18 : f32 to vector<8x128xf32>
    %58 = vector.broadcast %cst_19 : f32 to vector<8x128xf32>
    %59 = arith.select %27, %57, %58 : vector<8x128xi1>, vector<8x128xf32>
    %60 = arith.mulf %56, %33 : vector<8x128xf32>
    %61 = arith.addf %59, %60 : vector<8x128xf32>
    %cst_20 = arith.constant -0.00417768164 : f32
    %cst_21 = arith.constant 0.00943887047 : f32
    %62 = vector.broadcast %cst_20 : f32 to vector<8x128xf32>
    %63 = vector.broadcast %cst_21 : f32 to vector<8x128xf32>
    %64 = arith.select %27, %62, %63 : vector<8x128xi1>, vector<8x128xf32>
    %65 = arith.mulf %61, %33 : vector<8x128xf32>
    %66 = arith.addf %64, %65 : vector<8x128xf32>
    %cst_22 = arith.constant 0.246640727 : f32
    %cst_23 = arith.constant 1.00167406 : f32
    %67 = vector.broadcast %cst_22 : f32 to vector<8x128xf32>
    %68 = vector.broadcast %cst_23 : f32 to vector<8x128xf32>
    %69 = arith.select %27, %67, %68 : vector<8x128xi1>, vector<8x128xf32>
    %70 = arith.mulf %66, %33 : vector<8x128xf32>
    %71 = arith.addf %69, %70 : vector<8x128xf32>
    %cst_24 = arith.constant 1.50140941 : f32
    %cst_25 = arith.constant 2.83297682 : f32
    %72 = vector.broadcast %cst_24 : f32 to vector<8x128xf32>
    %73 = vector.broadcast %cst_25 : f32 to vector<8x128xf32>
    %74 = arith.select %27, %72, %73 : vector<8x128xi1>, vector<8x128xf32>
    %75 = arith.mulf %71, %33 : vector<8x128xf32>
    %76 = arith.addf %74, %75 : vector<8x128xf32>
    %77 = math.absf %19 : vector<8x128xf32>
    %cst_26 = arith.constant 1.000000e+00 : f32
    %78 = vector.broadcast %cst_26 : f32 to vector<8x128xf32>
    %79 = arith.cmpf oeq, %77, %78 : vector<8x128xf32>
    %cst_27 = arith.constant 0x7F800000 : f32
    %80 = vector.broadcast %cst_27 : f32 to vector<8x128xf32>
    %81 = arith.mulf %80, %19 : vector<8x128xf32>
    %82 = arith.mulf %76, %19 : vector<8x128xf32>
    %83 = arith.select %79, %81, %82 : vector<8x128xi1>, vector<8x128xf32>
    %cst_28 = arith.constant 1.41421354 : f32
    %84 = vector.broadcast %cst_28 : f32 to vector<8x128xf32>
    %85 = arith.mulf %84, %83 : vector<8x128xf32>
    %c0_29 = arith.constant 0 : index
    %c0_30 = arith.constant 0 : index
    %86 = vector.load %arg2[%c0_29, %c0_30] : memref<8x128xf32, #tpu.memory_space<vmem>>, vector<8x128xf32>
    %c0_31 = arith.constant 0 : index
    %c0_32 = arith.constant 0 : index
    %87 = vector.load %arg6[%c0_31, %c0_32] : memref<1x512xf32, #tpu.memory_space<vmem>>, vector<1x128xf32>
    %c0_33 = arith.constant 0 : index
    %c128 = arith.constant 128 : index
    %88 = vector.load %arg6[%c0_33, %c128] : memref<1x512xf32, #tpu.memory_space<vmem>>, vector<1x128xf32>
    %c0_34 = arith.constant 0 : index
    %c256 = arith.constant 256 : index
    %89 = vector.load %arg6[%c0_34, %c256] : memref<1x512xf32, #tpu.memory_space<vmem>>, vector<1x128xf32>
    %c0_35 = arith.constant 0 : index
    %c384 = arith.constant 384 : index
    %90 = vector.load %arg6[%c0_35, %c384] : memref<1x512xf32, #tpu.memory_space<vmem>>, vector<1x128xf32>
    %91 = arith.truncf %86 : vector<8x128xf32> to vector<8x128xbf16>
    %c0_36 = arith.constant 0 : index
    %c0_37 = arith.constant 0 : index
    %92 = vector.load %arg3[%c0_36, %c0_37] : memref<128x128xbf16, #tpu.memory_space<vmem>>, vector<128x128xbf16>
    %cst_38 = arith.constant dense<0.000000e+00> : vector<8x128xf32>
    %93 = tpu.matmul %91, %92, %cst_38 {dimension_numbers = #tpu.dot_dimension_numbers<[1], [0], [0], [1], [0, 0, 1, 1], [], []>} : vector<8x128xbf16>, vector<128x128xbf16>, vector<8x128xf32> -> vector<8x128xf32>
    %94 = vector.broadcast %87 : vector<1x128xf32> to vector<8x128xf32>
    %95 = arith.addf %93, %94 : vector<8x128xf32>
    %cst_39 = arith.constant 0.000000e+00 : f32
    %96 = vector.broadcast %cst_39 : f32 to vector<8x128xf32>
    %97 = arith.maximumf %95, %96 : vector<8x128xf32>
    %98 = arith.truncf %97 : vector<8x128xf32> to vector<8x128xbf16>
    %c0_40 = arith.constant 0 : index
    %c0_41 = arith.constant 0 : index
    %99 = vector.load %arg4[%c0_40, %c0_41] : memref<128x128xbf16, #tpu.memory_space<vmem>>, vector<128x128xbf16>
    %cst_42 = arith.constant dense<0.000000e+00> : vector<8x128xf32>
    %100 = tpu.matmul %98, %99, %cst_42 {dimension_numbers = #tpu.dot_dimension_numbers<[1], [0], [0], [1], [0, 0, 1, 1], [], []>} : vector<8x128xbf16>, vector<128x128xbf16>, vector<8x128xf32> -> vector<8x128xf32>
    %101 = vector.broadcast %88 : vector<1x128xf32> to vector<8x128xf32>
    %102 = arith.addf %100, %101 : vector<8x128xf32>
    %cst_43 = arith.constant 0.000000e+00 : f32
    %103 = vector.broadcast %cst_43 : f32 to vector<8x128xf32>
    %104 = arith.maximumf %102, %103 : vector<8x128xf32>
    %105 = arith.truncf %104 : vector<8x128xf32> to vector<8x128xbf16>
    %c0_44 = arith.constant 0 : index
    %c0_45 = arith.constant 0 : index
    %106 = vector.load %arg5[%c0_44, %c0_45] : memref<128x128xbf16, #tpu.memory_space<vmem>>, vector<128x128xbf16>
    %cst_46 = arith.constant dense<0.000000e+00> : vector<8x128xf32>
    %107 = tpu.matmul %105, %106, %cst_46 {dimension_numbers = #tpu.dot_dimension_numbers<[1], [0], [0], [1], [0, 0, 1, 1], [], []>} : vector<8x128xbf16>, vector<128x128xbf16>, vector<8x128xf32> -> vector<8x128xf32>
    %108 = vector.broadcast %89 : vector<1x128xf32> to vector<8x128xf32>
    %109 = arith.addf %107, %108 : vector<8x128xf32>
    %110 = math.tanh %109 : vector<8x128xf32>
    %111 = tpu.iota {dimensions = array<i32: 1>} : vector<8x128xi32>
    %c8_i32 = arith.constant 8 : i32
    %112 = vector.broadcast %c8_i32 : i32 to vector<8x128xi32>
    %113 = arith.cmpi slt, %111, %112 : vector<8x128xi32>
    %cst_47 = arith.constant 0.000000e+00 : f32
    %114 = vector.broadcast %cst_47 : f32 to vector<8x128xf32>
    %115 = arith.select %113, %85, %114 : vector<8x128xi1>, vector<8x128xf32>
    %116 = math.exp %90 : vector<1x128xf32>
    %117 = vector.broadcast %116 : vector<1x128xf32> to vector<8x128xf32>
    %118 = arith.mulf %117, %115 : vector<8x128xf32>
    %119 = arith.addf %110, %118 : vector<8x128xf32>
    %c0_48 = arith.constant 0 : index
    %c0_49 = arith.constant 0 : index
    %120 = vector.load %arg7[%c0_48, %c0_49] : memref<8x128xf32, #tpu.memory_space<vmem>>, vector<8x128xf32>
    tpu.vector_store %arg7[%c0_48, %c0_49], %119 {strides = array<i32>} : memref<8x128xf32, #tpu.memory_space<vmem>>, vector<8x128xf32>,
    %121 = vector.shape_cast %90 : vector<1x128xf32> to vector<1x1x128xf32>
    %cst_50 = arith.constant dense<0.000000e+00> : vector<1xf32>
    %122 = vector.multi_reduction <add>, %121, %cst_50 [1, 2] : vector<1x1x128xf32> to vector<1xf32>
    %123 = vector.shape_cast %122 : vector<1xf32> to vector<1x1x1xf32>
    %124 = vector.extract %123[0, 0, 0] : f32 from vector<1x1x1xf32>
    %cst_51 = arith.constant 0.000000e+00 : f32
    %125 = arith.subf %cst_51, %124 : f32
    %cst_52 = arith.constant 7.35150814 : f32
    %126 = arith.subf %125, %cst_52 : f32
    %127 = arith.mulf %115, %115 : vector<8x128xf32>
    %cst_53 = arith.constant dense<0.000000e+00> : vector<8xf32>
    %128 = vector.multi_reduction <add>, %127, %cst_53 [1] : vector<8x128xf32> to vector<8xf32>
    %129 = vector.shape_cast %128 : vector<8xf32> to vector<8x1xf32>
    %cst_54 = arith.constant -5.000000e-01 : f32
    %130 = vector.broadcast %cst_54 : f32 to vector<8x1xf32>
    %131 = arith.mulf %130, %129 : vector<8x1xf32>
    %132 = vector.broadcast %126 : f32 to vector<8x1xf32>
    %133 = arith.addf %131, %132 : vector<8x1xf32>
    %c0_55 = arith.constant 0 : index
    %c0_56 = arith.constant 0 : index
    %134 = vector.load %arg8[%c0_55, %c0_56] : memref<8x1xf32, #tpu.memory_space<vmem>>, vector<8x1xf32>
    tpu.vector_store %arg8[%c0_55, %c0_56], %133 {strides = array<i32>} : memref<8x1xf32, #tpu.memory_space<vmem>>, vector<8x1xf32>,
    return
  }
  func.func @transform_0(%arg0: i32) -> i32 {
    %c0_i32 = arith.constant 0 : i32
    %c0_i32_0 = arith.constant 0 : i32
    return %c0_i32 : i32
  }
  func.func @transform_1(%arg0: i32) -> (i32, i32) {
    %c0_i32 = arith.constant 0 : i32
    %c0_i32_0 = arith.constant 0 : i32
    return %arg0, %c0_i32 : i32, i32
  }
  func.func @transform_2(%arg0: i32) -> (i32, i32) {
    %c0_i32 = arith.constant 0 : i32
    %c0_i32_0 = arith.constant 0 : i32
    %c0_i32_1 = arith.constant 0 : i32
    return %c0_i32, %c0_i32_0 : i32, i32
  }
  func.func @transform_3(%arg0: i32) -> (i32, i32) {
    %c0_i32 = arith.constant 0 : i32
    %c0_i32_0 = arith.constant 0 : i32
    %c0_i32_1 = arith.constant 0 : i32
    return %c0_i32, %c0_i32_0 : i32, i32
  }
  func.func @transform_4(%arg0: i32) -> (i32, i32) {
    %c0_i32 = arith.constant 0 : i32
    %c0_i32_0 = arith.constant 0 : i32
    %c0_i32_1 = arith.constant 0 : i32
    return %c0_i32, %c0_i32_0 : i32, i32
  }
  func.func @transform_5(%arg0: i32) -> (i32, i32) {
    %c0_i32 = arith.constant 0 : i32
    %c0_i32_0 = arith.constant 0 : i32
    %c0_i32_1 = arith.constant 0 : i32
    return %c0_i32, %c0_i32_0 : i32, i32
  }
  func.func @transform_6(%arg0: i32) -> (i32, i32) {
    %c0_i32 = arith.constant 0 : i32
    %c0_i32_0 = arith.constant 0 : i32
    return %arg0, %c0_i32 : i32, i32
  }
  func.func @transform_7(%arg0: i32) -> (i32, i32) {
    %c0_i32 = arith.constant 0 : i32
    %c0_i32_0 = arith.constant 0 : i32
    return %arg0, %c0_i32 : i32, i32
  }
}

module attributes {stable_mosaic.version = 11 : i64} {
  func.func @kernel(%arg0: i32, %arg1: memref<8x128xf32, #tpu.memory_space<vmem>>, %arg2: memref<8x128xf32, #tpu.memory_space<vmem>>, %arg3: memref<128x128xbf16, #tpu.memory_space<vmem>>, %arg4: memref<128x128xbf16, #tpu.memory_space<vmem>>, %arg5: memref<128x128xbf16, #tpu.memory_space<vmem>>, %arg6: memref<1x512xf32, #tpu.memory_space<vmem>>, %arg7: memref<8x128xf32, #tpu.memory_space<vmem>>, %arg8: memref<8x1xf32, #tpu.memory_space<vmem>>) attributes {dimension_semantics = [#tpu.dimension_semantics<parallel>], iteration_bounds = array<i64: 1>, scalar_prefetch = 0 : i64, scratch_operands = 0 : i64, tpu.core_type = #tpu.core_type<tc>, window_params = [{transform_indices = @transform_0, window_bounds = array<i64: 8, 128>}, {transform_indices = @transform_1, window_bounds = array<i64: 8, 128>}, {pipeline_mode = #tpu.pipeline_mode<synchronous>, transform_indices = @transform_2, window_bounds = array<i64: 128, 128>}, {pipeline_mode = #tpu.pipeline_mode<synchronous>, transform_indices = @transform_3, window_bounds = array<i64: 128, 128>}, {pipeline_mode = #tpu.pipeline_mode<synchronous>, transform_indices = @transform_4, window_bounds = array<i64: 128, 128>}, {pipeline_mode = #tpu.pipeline_mode<synchronous>, transform_indices = @transform_5, window_bounds = array<i64: 1, 512>}, {transform_indices = @transform_6, window_bounds = array<i64: 8, 128>}, {transform_indices = @transform_7, window_bounds = array<i64: 8, 1>}]} {
    %c0 = arith.constant 0 : index
    %c0_0 = arith.constant 0 : index
    %0 = vector.load %arg2[%c0, %c0_0] : memref<8x128xf32, #tpu.memory_space<vmem>>, vector<8x128xf32>
    %c0_1 = arith.constant 0 : index
    %c0_2 = arith.constant 0 : index
    %1 = vector.load %arg1[%c0_1, %c0_2] : memref<8x128xf32, #tpu.memory_space<vmem>>, vector<8x128xf32>
    %c0_3 = arith.constant 0 : index
    %c0_4 = arith.constant 0 : index
    %2 = vector.load %arg6[%c0_3, %c0_4] : memref<1x512xf32, #tpu.memory_space<vmem>>, vector<1x128xf32>
    %c0_5 = arith.constant 0 : index
    %c128 = arith.constant 128 : index
    %3 = vector.load %arg6[%c0_5, %c128] : memref<1x512xf32, #tpu.memory_space<vmem>>, vector<1x128xf32>
    %c0_6 = arith.constant 0 : index
    %c256 = arith.constant 256 : index
    %4 = vector.load %arg6[%c0_6, %c256] : memref<1x512xf32, #tpu.memory_space<vmem>>, vector<1x128xf32>
    %c0_7 = arith.constant 0 : index
    %c384 = arith.constant 384 : index
    %5 = vector.load %arg6[%c0_7, %c384] : memref<1x512xf32, #tpu.memory_space<vmem>>, vector<1x128xf32>
    %6 = arith.truncf %1 : vector<8x128xf32> to vector<8x128xbf16>
    %c0_8 = arith.constant 0 : index
    %c0_9 = arith.constant 0 : index
    %7 = vector.load %arg3[%c0_8, %c0_9] : memref<128x128xbf16, #tpu.memory_space<vmem>>, vector<128x128xbf16>
    %cst = arith.constant dense<0.000000e+00> : vector<8x128xf32>
    %8 = tpu.matmul %6, %7, %cst {dimension_numbers = #tpu.dot_dimension_numbers<[1], [0], [0], [1], [0, 0, 1, 1], [], []>} : vector<8x128xbf16>, vector<128x128xbf16>, vector<8x128xf32> -> vector<8x128xf32>
    %9 = vector.broadcast %2 : vector<1x128xf32> to vector<8x128xf32>
    %10 = arith.addf %8, %9 : vector<8x128xf32>
    %cst_10 = arith.constant 0.000000e+00 : f32
    %11 = vector.broadcast %cst_10 : f32 to vector<8x128xf32>
    %12 = arith.maximumf %10, %11 : vector<8x128xf32>
    %13 = arith.truncf %12 : vector<8x128xf32> to vector<8x128xbf16>
    %c0_11 = arith.constant 0 : index
    %c0_12 = arith.constant 0 : index
    %14 = vector.load %arg4[%c0_11, %c0_12] : memref<128x128xbf16, #tpu.memory_space<vmem>>, vector<128x128xbf16>
    %cst_13 = arith.constant dense<0.000000e+00> : vector<8x128xf32>
    %15 = tpu.matmul %13, %14, %cst_13 {dimension_numbers = #tpu.dot_dimension_numbers<[1], [0], [0], [1], [0, 0, 1, 1], [], []>} : vector<8x128xbf16>, vector<128x128xbf16>, vector<8x128xf32> -> vector<8x128xf32>
    %16 = vector.broadcast %3 : vector<1x128xf32> to vector<8x128xf32>
    %17 = arith.addf %15, %16 : vector<8x128xf32>
    %cst_14 = arith.constant 0.000000e+00 : f32
    %18 = vector.broadcast %cst_14 : f32 to vector<8x128xf32>
    %19 = arith.maximumf %17, %18 : vector<8x128xf32>
    %20 = arith.truncf %19 : vector<8x128xf32> to vector<8x128xbf16>
    %c0_15 = arith.constant 0 : index
    %c0_16 = arith.constant 0 : index
    %21 = vector.load %arg5[%c0_15, %c0_16] : memref<128x128xbf16, #tpu.memory_space<vmem>>, vector<128x128xbf16>
    %cst_17 = arith.constant dense<0.000000e+00> : vector<8x128xf32>
    %22 = tpu.matmul %20, %21, %cst_17 {dimension_numbers = #tpu.dot_dimension_numbers<[1], [0], [0], [1], [0, 0, 1, 1], [], []>} : vector<8x128xbf16>, vector<128x128xbf16>, vector<8x128xf32> -> vector<8x128xf32>
    %23 = vector.broadcast %4 : vector<1x128xf32> to vector<8x128xf32>
    %24 = arith.addf %22, %23 : vector<8x128xf32>
    %25 = math.tanh %24 : vector<8x128xf32>
    %26 = tpu.iota {dimensions = array<i32: 1>} : vector<8x128xi32>
    %c8_i32 = arith.constant 8 : i32
    %27 = vector.broadcast %c8_i32 : i32 to vector<8x128xi32>
    %28 = arith.cmpi slt, %26, %27 : vector<8x128xi32>
    %cst_18 = arith.constant 0.000000e+00 : f32
    %29 = vector.broadcast %cst_18 : f32 to vector<8x128xf32>
    %30 = arith.select %28, %0, %29 : vector<8x128xi1>, vector<8x128xf32>
    %31 = math.exp %5 : vector<1x128xf32>
    %32 = vector.broadcast %31 : vector<1x128xf32> to vector<8x128xf32>
    %33 = arith.mulf %32, %30 : vector<8x128xf32>
    %34 = arith.addf %25, %33 : vector<8x128xf32>
    %c0_19 = arith.constant 0 : index
    %c0_20 = arith.constant 0 : index
    %35 = vector.load %arg7[%c0_19, %c0_20] : memref<8x128xf32, #tpu.memory_space<vmem>>, vector<8x128xf32>
    tpu.vector_store %arg7[%c0_19, %c0_20], %34 {strides = array<i32>} : memref<8x128xf32, #tpu.memory_space<vmem>>, vector<8x128xf32>,
    %36 = vector.shape_cast %5 : vector<1x128xf32> to vector<1x1x128xf32>
    %cst_21 = arith.constant dense<0.000000e+00> : vector<1xf32>
    %37 = vector.multi_reduction <add>, %36, %cst_21 [1, 2] : vector<1x1x128xf32> to vector<1xf32>
    %38 = vector.shape_cast %37 : vector<1xf32> to vector<1x1x1xf32>
    %39 = vector.extract %38[0, 0, 0] : f32 from vector<1x1x1xf32>
    %cst_22 = arith.constant 0.000000e+00 : f32
    %40 = arith.subf %cst_22, %39 : f32
    %cst_23 = arith.constant 7.35150814 : f32
    %41 = arith.subf %40, %cst_23 : f32
    %42 = arith.mulf %30, %30 : vector<8x128xf32>
    %cst_24 = arith.constant dense<0.000000e+00> : vector<8xf32>
    %43 = vector.multi_reduction <add>, %42, %cst_24 [1] : vector<8x128xf32> to vector<8xf32>
    %44 = vector.shape_cast %43 : vector<8xf32> to vector<8x1xf32>
    %cst_25 = arith.constant -5.000000e-01 : f32
    %45 = vector.broadcast %cst_25 : f32 to vector<8x1xf32>
    %46 = arith.mulf %45, %44 : vector<8x1xf32>
    %47 = vector.broadcast %41 : f32 to vector<8x1xf32>
    %48 = arith.addf %46, %47 : vector<8x1xf32>
    %c0_26 = arith.constant 0 : index
    %c0_27 = arith.constant 0 : index
    %49 = vector.load %arg8[%c0_26, %c0_27] : memref<8x1xf32, #tpu.memory_space<vmem>>, vector<8x1xf32>
    tpu.vector_store %arg8[%c0_26, %c0_27], %48 {strides = array<i32>} : memref<8x1xf32, #tpu.memory_space<vmem>>, vector<8x1xf32>,
    return
  }
  func.func @transform_0(%arg0: i32) -> (i32, i32) {
    %c0_i32 = arith.constant 0 : i32
    %c0_i32_0 = arith.constant 0 : i32
    return %arg0, %c0_i32 : i32, i32
  }
  func.func @transform_1(%arg0: i32) -> (i32, i32) {
    %c0_i32 = arith.constant 0 : i32
    %c0_i32_0 = arith.constant 0 : i32
    return %arg0, %c0_i32 : i32, i32
  }
  func.func @transform_2(%arg0: i32) -> (i32, i32) {
    %c0_i32 = arith.constant 0 : i32
    %c0_i32_0 = arith.constant 0 : i32
    %c0_i32_1 = arith.constant 0 : i32
    return %c0_i32, %c0_i32_0 : i32, i32
  }
  func.func @transform_3(%arg0: i32) -> (i32, i32) {
    %c0_i32 = arith.constant 0 : i32
    %c0_i32_0 = arith.constant 0 : i32
    %c0_i32_1 = arith.constant 0 : i32
    return %c0_i32, %c0_i32_0 : i32, i32
  }
  func.func @transform_4(%arg0: i32) -> (i32, i32) {
    %c0_i32 = arith.constant 0 : i32
    %c0_i32_0 = arith.constant 0 : i32
    %c0_i32_1 = arith.constant 0 : i32
    return %c0_i32, %c0_i32_0 : i32, i32
  }
  func.func @transform_5(%arg0: i32) -> (i32, i32) {
    %c0_i32 = arith.constant 0 : i32
    %c0_i32_0 = arith.constant 0 : i32
    %c0_i32_1 = arith.constant 0 : i32
    return %c0_i32, %c0_i32_0 : i32, i32
  }
  func.func @transform_6(%arg0: i32) -> (i32, i32) {
    %c0_i32 = arith.constant 0 : i32
    %c0_i32_0 = arith.constant 0 : i32
    return %arg0, %c0_i32 : i32, i32
  }
  func.func @transform_7(%arg0: i32) -> (i32, i32) {
    %c0_i32 = arith.constant 0 : i32
    %c0_i32_0 = arith.constant 0 : i32
    return %arg0, %c0_i32 : i32, i32
  }
}

</mosaic_0001>

<llo_original>
// kernel: tpu_custom_call.1
$region0: #{tpu_custom_call.1}
  #allocation0 [shape = 'u32[]', space=smem, size = 0x4, offset = 0x4, fixed_abs, tag = 'smem constant byte address 0x4 - core index']
  #allocation1 [shape = 'u32[144,128]{1,0:T(1,128)}', space=vmem, size = 0x12000, scoped, tag = 'internal scratch']
  #allocation2 [shape = 's32[1]{0:T(128)S(6)}', space=smem, size = 0x200, scoped, tag = 'scoped memory for tpu_custom_call.1']
  %s0 = inlined_call_operand.<no memory space> [shape: s32[1], index: 0, kind: input, shape index: {}]
  %s1 = inlined_call_operand.hbm [shape: f32[8,128], index: 1, kind: input, shape index: {}]
  %s2 = inlined_call_operand.hbm [shape: bf16[128,128], index: 2, kind: input, shape index: {}]
  %s3 = inlined_call_operand.hbm [shape: bf16[128,128], index: 3, kind: input, shape index: {}]
  %s4 = inlined_call_operand.hbm [shape: bf16[128,128], index: 4, kind: input, shape index: {}]
  %s5 = inlined_call_operand.vmem [shape: f32[1,512], index: 5, kind: input, shape index: {}]
  %s6 = inlined_call_operand.hbm [shape: f32[8,128], index: 6, kind: output, shape index: {0}]
  %s7 = inlined_call_operand.vmem [shape: f32[8,1], index: 7, kind: output, shape index: {1}]
  %8 = xla_tuple %s6, %s7
  %s9 = sld [smem:[#allocation0]]
  $region58: #{tpu_custom_call.1} parent=0
    _
  %s11 = ssub.s32 1, %s9
  %s12 = scalar_select 0, %s11, %s9
  %13 = sst [smem:[#allocation2]] %s0
  $region1: #{tpu_custom_call.1} parent=0
    #allocation3 [shape = 'u8[4096]{0}', space=vmem, size = 0x1000, scoped, tag = 'input window, operand 1, single buffered']
    #allocation4 [shape = 's32[1]{0}', space=sflag, size = 0x4, scoped, tag = 'scoped memory for tpu_custom_call.1']
    #allocation5 [shape = 's32[1]{0}', space=sflag, size = 0x4, scoped, tag = 'scoped memory for tpu_custom_call.1']
    #allocation6 [shape = 'u8[32768]{0}', space=vmem, size = 0x8000, scoped, tag = 'input window, operand 2, single buffered']
    #allocation7 [shape = 's32[1]{0}', space=sflag, size = 0x4, scoped, tag = 'scoped memory for tpu_custom_call.1']
    #allocation8 [shape = 'u8[32768]{0}', space=vmem, size = 0x8000, scoped, tag = 'input window, operand 3, single buffered']
    #allocation9 [shape = 'u8[32768]{0}', space=vmem, size = 0x8000, scoped, tag = 'input window, operand 4, single buffered']
    #allocation10 [shape = 's32[1]{0}', space=sflag, size = 0x4, scoped, tag = 'scoped memory for tpu_custom_call.1']
    #allocation11 [shape = 'u8[4096]{0}', space=vmem, size = 0x1000, scoped, tag = 'output window, operand 0, single buffered']
    %14 = vsyncpa [#allocation4], 0
    %15 = vsyncpa [#allocation7], 0
    %16 = vsyncpa [#allocation10], 0
    %17 = vsyncpa [#allocation5], 0
    // Predicated region
    $region2: #{tpu_custom_call.1} parent=1 // pred_check
      _
    $region3: #{tpu_custom_call.1} parent=1 // pred_check_branch
      %19 = sbr.rel (0) target = $region5
    $region4: #{tpu_custom_call.1} parent=1 // pred_region
      _
    $region5: #{tpu_custom_call.1} parent=1 // pred_fallthru
      _
    // Predicated region
    $region6: #{tpu_custom_call.1} parent=1 // pred_check
      _
    $region7: #{tpu_custom_call.1} parent=1 // pred_check_branch
      %21 = sbr.rel (0) target = $region9
    $region8: #{tpu_custom_call.1} parent=1 // pred_region
      %s23 = ssub.s32 128, 128
      %24 = vsyncadd [#allocation4], %s23
      %s26 = sshll.u32 [#allocation3], 4
      %s27 = int_to_ptr.vmem [resolvable:$true] %s26
      %29 = dma.hbm_to_vmem [thread:$0]  %s1, 128, %s27, [#allocation4]
    $region9: #{tpu_custom_call.1} parent=1 // pred_fallthru
      _
    // Predicated region
    $region10: #{tpu_custom_call.1} parent=1 // pred_check
      _
    $region11: #{tpu_custom_call.1} parent=1 // pred_check_branch
      %31 = sbr.rel (0) target = $region13
    $region12: #{tpu_custom_call.1} parent=1 // pred_region
      %s33 = ssub.s32 1024, 1024
      %34 = vsyncadd [#allocation7], %s33
      %s35 = sshll.u32 [#allocation6], 4
      %s36 = int_to_ptr.vmem [resolvable:$true] %s35
      %41 = dma.hbm_to_vmem [thread:$0]  %s2, 1024, %s36, [#allocation7], 64, 64, 4
    $region13: #{tpu_custom_call.1} parent=1 // pred_fallthru
      _
    // Predicated region
    $region14: #{tpu_custom_call.1} parent=1 // pred_check
      _
    $region15: #{tpu_custom_call.1} parent=1 // pred_check_branch
      %43 = sbr.rel (0) target = $region17
    $region16: #{tpu_custom_call.1} parent=1 // pred_region
      %s45 = ssub.s32 1024, 1024
      %46 = vsyncadd [#allocation7], %s45
      %s47 = sshll.u32 [#allocation8], 4
      %s48 = int_to_ptr.vmem [resolvable:$true] %s47
      %53 = dma.hbm_to_vmem [thread:$0]  %s3, 1024, %s48, [#allocation7], 64, 64, 4
    $region17: #{tpu_custom_call.1} parent=1 // pred_fallthru
      _
    // Predicated region
    $region18: #{tpu_custom_call.1} parent=1 // pred_check
      _
    $region19: #{tpu_custom_call.1} parent=1 // pred_check_branch
      %55 = sbr.rel (0) target = $region21
    $region20: #{tpu_custom_call.1} parent=1 // pred_region
      %s57 = ssub.s32 1024, 1024
      %58 = vsyncadd [#allocation10], %s57
      %s59 = sshll.u32 [#allocation9], 4
      %s60 = int_to_ptr.vmem [resolvable:$true] %s59
      %65 = dma.hbm_to_vmem [thread:$0]  %s4, 1024, %s60, [#allocation10], 64, 64, 4
    $region21: #{tpu_custom_call.1} parent=1 // pred_fallthru
      _
    // Predicated region
    $region22: #{tpu_custom_call.1} parent=1 // pred_check
      _
    $region23: #{tpu_custom_call.1} parent=1 // pred_check_branch
      %67 = sbr.rel (0) target = $region25
    $region24: #{tpu_custom_call.1} parent=1 // pred_region
      _
    $region25: #{tpu_custom_call.1} parent=1 // pred_fallthru
      _
    // Predicated region
    $region26: #{tpu_custom_call.1} parent=1 // pred_check
      _
    $region27: #{tpu_custom_call.1} parent=1 // pred_check_branch
      %69 = sbr.rel (0) target = $region29
    $region28: #{tpu_custom_call.1} parent=1 // pred_region
      %70 = dma.done [#allocation4], 128
    $region29: #{tpu_custom_call.1} parent=1 // pred_fallthru
      _
    // Predicated region
    $region30: #{tpu_custom_call.1} parent=1 // pred_check
      _
    $region31: #{tpu_custom_call.1} parent=1 // pred_check_branch
      %72 = sbr.rel (0) target = $region33
    $region32: #{tpu_custom_call.1} parent=1 // pred_region
      %73 = dma.done [#allocation7], 1024
    $region33: #{tpu_custom_call.1} parent=1 // pred_fallthru
      _
    // Predicated region
    $region34: #{tpu_custom_call.1} parent=1 // pred_check
      _
    $region35: #{tpu_custom_call.1} parent=1 // pred_check_branch
      %75 = sbr.rel (0) target = $region37
    $region36: #{tpu_custom_call.1} parent=1 // pred_region
      %76 = dma.done [#allocation7], 1024
    $region37: #{tpu_custom_call.1} parent=1 // pred_fallthru
      _
    // Predicated region
    $region38: #{tpu_custom_call.1} parent=1 // pred_check
      _
    $region39: #{tpu_custom_call.1} parent=1 // pred_check_branch
      %78 = sbr.rel (0) target = $region41
    $region40: #{tpu_custom_call.1} parent=1 // pred_region
      %79 = dma.done [#allocation10], 1024
    $region41: #{tpu_custom_call.1} parent=1 // pred_fallthru
      _
    %s81 = sld [smem:[#allocation2]]
    %s82 = smul.u32 0, 1000003
    %s83 = sadd.s32 %s81, %s82
    %v84 = vlaneseq
    %v85 = vstv %s83
    %v86 = vxor.u32 %v85, %v85
    %v87 = vxor.u32 %v86, 466688986
    %v88 = vadd.s32 %v84, %v85
    %v89 = vadd.s32 %v88, %v88
    %v90 = vshll.u32 %v88, 13
    %v91 = vshrl.u32 %v88, 19
    %v92 = vor.u32 %v90, %v91
    %v93 = vxor.u32 %v89, %v92
    %v94 = vadd.s32 %v89, %v93
    %v95 = vshll.u32 %v93, 15
    %v96 = vshrl.u32 %v93, 17
    %v97 = vor.u32 %v95, %v96
    %v98 = vxor.u32 %v94, %v97
    %v99 = vadd.s32 %v94, %v98
    %v100 = vshll.u32 %v98, 26
    %v101 = vshrl.u32 %v98, 6
    %v102 = vor.u32 %v100, %v101
    %v103 = vxor.u32 %v99, %v102
    %v104 = vadd.s32 %v99, %v103
    %v105 = vshll.u32 %v103, 6
    %v106 = vshrl.u32 %v103, 26
    %v107 = vor.u32 %v105, %v106
    %v108 = vxor.u32 %v104, %v107
    %v109 = vadd.s32 %v104, %v85
    %v110 = vadd.s32 %v108, %v87
    %v111 = vadd.s32 %v110, 1
    %v112 = vadd.s32 %v109, %v111
    %v113 = vshll.u32 %v111, 17
    %v114 = vshrl.u32 %v111, 15
    %v115 = vor.u32 %v113, %v114
    %v116 = vxor.u32 %v112, %v115
    %v117 = vadd.s32 %v112, %v116
    %v118 = vshll.u32 %v116, 29
    %v119 = vshrl.u32 %v116, 3
    %v120 = vor.u32 %v118, %v119
    %v121 = vxor.u32 %v117, %v120
    %v122 = vadd.s32 %v117, %v121
    %v123 = vshll.u32 %v121, 16
    %v124 = vshrl.u32 %v121, 16
    %v125 = vor.u32 %v123, %v124
    %v126 = vxor.u32 %v122, %v125
    %v127 = vadd.s32 %v122, %v126
    %v128 = vshll.u32 %v126, 24
    %v129 = vshrl.u32 %v126, 8
    %v130 = vor.u32 %v128, %v129
    %v131 = vxor.u32 %v127, %v130
    %v132 = vadd.s32 %v127, %v87
    %v133 = vadd.s32 %v131, %v85
    %v134 = vadd.s32 %v133, 2
    %v135 = vadd.s32 %v132, %v134
    %v136 = vshll.u32 %v134, 13
    %v137 = vshrl.u32 %v134, 19
    %v138 = vor.u32 %v136, %v137
    %v139 = vxor.u32 %v135, %v138
    %v140 = vadd.s32 %v135, %v139
    %v141 = vshll.u32 %v139, 15
    %v142 = vshrl.u32 %v139, 17
    %v143 = vor.u32 %v141, %v142
    %v144 = vxor.u32 %v140, %v143
    %v145 = vadd.s32 %v140, %v144
    %v146 = vshll.u32 %v144, 26
    %v147 = vshrl.u32 %v144, 6
    %v148 = vor.u32 %v146, %v147
    %v149 = vxor.u32 %v145, %v148
    %v150 = vadd.s32 %v145, %v149
    %v151 = vshll.u32 %v149, 6
    %v152 = vshrl.u32 %v149, 26
    %v153 = vor.u32 %v151, %v152
    %v154 = vxor.u32 %v150, %v153
    %v155 = vadd.s32 %v150, %v85
    %v156 = vadd.s32 %v154, %v85
    %v157 = vadd.s32 %v156, 3
    %v158 = vadd.s32 %v155, %v157
    %v159 = vshll.u32 %v157, 17
    %v160 = vshrl.u32 %v157, 15
    %v161 = vor.u32 %v159, %v160
    %v162 = vxor.u32 %v158, %v161
    %v163 = vadd.s32 %v158, %v162
    %v164 = vshll.u32 %v162, 29
    %v165 = vshrl.u32 %v162, 3
    %v166 = vor.u32 %v164, %v165
    %v167 = vxor.u32 %v163, %v166
    %v168 = vadd.s32 %v163, %v167
    %v169 = vshll.u32 %v167, 16
    %v170 = vshrl.u32 %v167, 16
    %v171 = vor.u32 %v169, %v170
    %v172 = vxor.u32 %v168, %v171
    %v173 = vadd.s32 %v168, %v172
    %v174 = vshll.u32 %v172, 24
    %v175 = vshrl.u32 %v172, 8
    %v176 = vor.u32 %v174, %v175
    %v177 = vxor.u32 %v173, %v176
    %v178 = vadd.s32 %v173, %v85
    %v179 = vadd.s32 %v177, %v87
    %v180 = vadd.s32 %v179, 4
    %v181 = vadd.s32 %v178, %v180
    %v182 = vshll.u32 %v180, 13
    %v183 = vshrl.u32 %v180, 19
    %v184 = vor.u32 %v182, %v183
    %v185 = vxor.u32 %v181, %v184
    %v186 = vadd.s32 %v181, %v185
    %v187 = vshll.u32 %v185, 15
    %v188 = vshrl.u32 %v185, 17
    %v189 = vor.u32 %v187, %v188
    %v190 = vxor.u32 %v186, %v189
    %v191 = vadd.s32 %v186, %v190
    %v192 = vshll.u32 %v190, 26
    %v193 = vshrl.u32 %v190, 6
    %v194 = vor.u32 %v192, %v193
    %v195 = vxor.u32 %v191, %v194
    %v196 = vadd.s32 %v191, %v195
    %v197 = vshll.u32 %v195, 6
    %v198 = vshrl.u32 %v195, 26
    %v199 = vor.u32 %v197, %v198
    %v200 = vxor.u32 %v196, %v199
    %v201 = vadd.s32 %v196, %v87
    %v202 = vadd.s32 %v200, %v85
    %v203 = vadd.s32 %v202, 5
    %v204 = vxor.u32 %v201, %v203
    %205 = set.rngseed %v204
    %v206 = vrng
    %v207 = vshrl.u32 %v206, 9
    %v208 = vor.u32 %v207, 1065353216
    %v210 = vsub.f32 %v208, 1.0
    %v211 = vmul.f32 %v210, 2.0
    %v212 = vadd.f32 %v211, -0.99999994
    %v213 = vmax.f32 %v212, -0.99999994
    %v214 = vsub.f32 0.0, %v213
    %v215 = vmul.f32 %v213, %v214
    %v216 = vadd.f32 %v215, 1.0
    %v217 = vlog2.pop %v216
    %v218 = vmul.f32 %v217, 0.6931472
    %v219 = vmul.f32 -0.5, %v215
    %v220 = vadd.f32 %v219, 1.0
    %v221 = vmul.f32 %v220, %v215
    %v222 = vand.u32 2147483647, %v215
    %vm223 = vcmp.lt.f32.partialorder %v222, 0.0004427343
    %v224 = vsel %vm223, %v221, %v218
    %v225 = vsub.f32 0.0, %v224
    %vm226 = vcmp.lt.f32.partialorder %v225, 5.0
    %v227 = vsub.f32 %v225, 2.5
    %v228 = vrsqrt.pop %v225
    %v229 = vmul.f32 %v225, %v228
    %vm230 = vcmp.eq.f32.partialorder %v225, inf
    %v231 = vsel %vm230, %v225, %v229
    %vm232 = vcmp.eq.f32.partialorder %v225, 0.0
    %v233 = vand.u32 %v225, 2147483648
    %v234 = vsel %vm232, %v233, %v231
    %v235 = vsub.f32 %v234, 3.0
    %v236 = vsel %vm226, %v227, %v235
    %v237 = vsel %vm226, 2.8102264e-08, -0.00020021426
    %v238 = vsel %vm226, 3.4327394e-07, 0.00010095056
    %v239 = vmul.f32 %v237, %v236
    %v240 = vadd.f32 %v238, %v239
    %v241 = vsel %vm226, -3.5233877e-06, 0.0013493432
    %v242 = vmul.f32 %v240, %v236
    %v243 = vadd.f32 %v241, %v242
    %v244 = vsel %vm226, -4.3915065e-06, -0.0036734284
    %v245 = vmul.f32 %v243, %v236
    %v246 = vadd.f32 %v244, %v245
    %v247 = vsel %vm226, 0.00021858087, 0.0057395077
    %v248 = vmul.f32 %v246, %v236
    %v249 = vadd.f32 %v247, %v248
    %v250 = vsel %vm226, -0.001253725, -0.0076224613
    %v251 = vmul.f32 %v249, %v236
    %v252 = vadd.f32 %v250, %v251
    %v253 = vsel %vm226, -0.0041776816, 0.0094388705
    %v254 = vmul.f32 %v252, %v236
    %v255 = vadd.f32 %v253, %v254
    %v256 = vsel %vm226, 0.24664073, 1.001674
    %v257 = vmul.f32 %v255, %v236
    %v258 = vadd.f32 %v256, %v257
    %v259 = vsel %vm226, 1.5014094, 2.8329768
    %v260 = vmul.f32 %v258, %v236
    %v261 = vadd.f32 %v259, %v260
    %v262 = vand.u32 2147483647, %v213
    %vm263 = vcmp.eq.f32.partialorder %v262, 1.0
    %v264 = vmul.f32 %v213, inf
    %v265 = vmul.f32 %v261, %v213
    %v266 = vsel %vm263, %v264, %v265
    %v267 = vmul.f32 %v266, 1.4142135
    %v268 = vld [vmem:[#allocation3] sm:$0xff]
    %v269 = vld [vmem:[%s5] sm:$0x1]
    %v270 = vld [vmem:[%s5 + $0x1] sm:$0x1]
    %v271 = vld [vmem:[%s5 + $0x2] sm:$0x1]
    %v272 = vld [vmem:[%s5 + $0x3] sm:$0x1]
    %v273 = vpack.c.bf16 %v268, %v268
    %v274 = vld [vmem:[#allocation6] sm:$0xf]
    %v275 = vld [vmem:[#allocation6 + $0x4] sm:$0xf]
    %v276 = vld [vmem:[#allocation6 + $0x8] sm:$0xf]
    %v277 = vld [vmem:[#allocation6 + $0xc] sm:$0xf]
    %v278 = vld [vmem:[#allocation6 + $0x10] sm:$0xf]
    %v279 = vld [vmem:[#allocation6 + $0x14] sm:$0xf]
    %v280 = vld [vmem:[#allocation6 + $0x18] sm:$0xf]
    %v281 = vld [vmem:[#allocation6 + $0x1c] sm:$0xf]
    %v282 = vld [vmem:[#allocation6 + $0x20] sm:$0xf]
    %v283 = vld [vmem:[#allocation6 + $0x24] sm:$0xf]
    %v284 = vld [vmem:[#allocation6 + $0x28] sm:$0xf]
    %v285 = vld [vmem:[#allocation6 + $0x2c] sm:$0xf]
    %v286 = vld [vmem:[#allocation6 + $0x30] sm:$0xf]
    %v287 = vld [vmem:[#allocation6 + $0x34] sm:$0xf]
    %v288 = vld [vmem:[#allocation6 + $0x38] sm:$0xf]
    %v289 = vld [vmem:[#allocation6 + $0x3c] sm:$0xf]
    %v291 = vlaneseq
    %v292 = vshrl.u32 %v291, 7
    %v293 = vsub.s32 0, %v292
    %v294 = vrot.slane %v269, %v293
    %v312 = vunpack.c.l.b16 %v274
    %v313 = vunpack.c.l.b16 %v275
    %v314 = vunpack.c.l.b16 %v276
    %v315 = vunpack.c.l.b16 %v277
    %v316 = vunpack.c.l.b16 %v278
    %v317 = vunpack.c.l.b16 %v279
    %v318 = vunpack.c.l.b16 %v280
    %v319 = vunpack.c.l.b16 %v281
    %v320 = vunpack.c.l.b16 %v282
    %v321 = vunpack.c.l.b16 %v283
    %v322 = vunpack.c.l.b16 %v284
    %v323 = vunpack.c.l.b16 %v285
    %v324 = vunpack.c.l.b16 %v286
    %v325 = vunpack.c.l.b16 %v287
    %v326 = vunpack.c.l.b16 %v288
    %v327 = vunpack.c.l.b16 %v289
    %v328 = vpack.c.b16 %v313, %v312
    %v329 = vpack.c.b16 %v315, %v314
    %v330 = vpack.c.b16 %v317, %v316
    %v331 = vpack.c.b16 %v319, %v318
    %v332 = vpack.c.b16 %v321, %v320
    %v333 = vpack.c.b16 %v323, %v322
    %v334 = vpack.c.b16 %v325, %v324
    %v335 = vpack.c.b16 %v327, %v326
    %344 = vmatprep.subr.bf16.mxu0 0
    %345 = vmatpush1.bf16.msra.mxu0 %v335
    %346 = vmatprep.subr.bf16.mxu0 0
    %347 = vmatpush1.bf16.msra.mxu0 %v334
    %348 = vmatprep.subr.bf16.mxu0 0
    %349 = vmatpush1.bf16.msra.mxu0 %v333
    %350 = vmatprep.subr.bf16.mxu0 0
    %351 = vmatpush1.bf16.msra.mxu0 %v332
    %352 = vmatprep.subr.bf16.mxu0 0
    %353 = vmatpush1.bf16.msra.mxu0 %v331
    %354 = vmatprep.subr.bf16.mxu0 0
    %355 = vmatpush1.bf16.msra.mxu0 %v330
    %356 = vmatprep.subr.bf16.mxu0 0
    %357 = vmatpush1.bf16.msra.mxu0 %v329
    %358 = vmatprep.subr.bf16.mxu0 0
    %359 = vmatpush1.bf16.msra.mxu0 %v328
    %360 = vmatprep.subr.bf16.mxu0 0
    %361 = vmatpush2.bf16.msra.mxu0 0
    %362 = vmatprep.subr.bf16.mxu0 0
    %363 = vmatpush2.bf16.msra.mxu0 0
    %364 = vmatprep.subr.bf16.mxu0 0
    %365 = vmatpush2.bf16.msra.mxu0 0
    %366 = vmatprep.subr.bf16.mxu0 0
    %367 = vmatpush2.bf16.msra.mxu0 0
    %368 = vmatprep.subr.bf16.mxu0 0
    %369 = vmatpush2.bf16.msra.mxu0 0
    %370 = vmatprep.subr.bf16.mxu0 0
    %371 = vmatpush2.bf16.msra.mxu0 0
    %372 = vmatprep.subr.bf16.mxu0 0
    %373 = vmatpush2.bf16.msra.mxu0 0
    %374 = vmatprep.subr.bf16.mxu0 0
    %375 = vmatpush2.bf16.msra.mxu0 0
    %376 = vmatprep.mubr.bf16.mxu0 0
    %377 = vmatmul.mubr.bf16.gmra.mxu0 %v273
    %v378 = vpop.f32.mrf.mxu0
    %v379 = vadd.f32 %v294, %v378
    %v380 = vpop.f32.mrf.mxu0
    %v381 = vpop.f32.mrf.mxu0
    %v382 = vpop.f32.mrf.mxu0
    %383 = vdwg.mxu0
    %v384 = vmax.f32 %v379, 0.0
    %v385 = vpack.c.bf16 %v384, %v384
    %v386 = vld [vmem:[#allocation8] sm:$0xf]
    %v387 = vld [vmem:[#allocation8 + $0x4] sm:$0xf]
    %v388 = vld [vmem:[#allocation8 + $0x8] sm:$0xf]
    %v389 = vld [vmem:[#allocation8 + $0xc] sm:$0xf]
    %v390 = vld [vmem:[#allocation8 + $0x10] sm:$0xf]
    %v391 = vld [vmem:[#allocation8 + $0x14] sm:$0xf]
    %v392 = vld [vmem:[#allocation8 + $0x18] sm:$0xf]
    %v393 = vld [vmem:[#allocation8 + $0x1c] sm:$0xf]
    %v394 = vld [vmem:[#allocation8 + $0x20] sm:$0xf]
    %v395 = vld [vmem:[#allocation8 + $0x24] sm:$0xf]
    %v396 = vld [vmem:[#allocation8 + $0x28] sm:$0xf]
    %v397 = vld [vmem:[#allocation8 + $0x2c] sm:$0xf]
    %v398 = vld [vmem:[#allocation8 + $0x30] sm:$0xf]
    %v399 = vld [vmem:[#allocation8 + $0x34] sm:$0xf]
    %v400 = vld [vmem:[#allocation8 + $0x38] sm:$0xf]
    %v401 = vld [vmem:[#allocation8 + $0x3c] sm:$0xf]
    %v403 = vlaneseq
    %v404 = vshrl.u32 %v403, 7
    %v405 = vsub.s32 0, %v404
    %v406 = vrot.slane %v270, %v405
    %v424 = vunpack.c.l.b16 %v386
    %v425 = vunpack.c.l.b16 %v387
    %v426 = vunpack.c.l.b16 %v388
    %v427 = vunpack.c.l.b16 %v389
    %v428 = vunpack.c.l.b16 %v390
    %v429 = vunpack.c.l.b16 %v391
    %v430 = vunpack.c.l.b16 %v392
    %v431 = vunpack.c.l.b16 %v393
    %v432 = vunpack.c.l.b16 %v394
    %v433 = vunpack.c.l.b16 %v395
    %v434 = vunpack.c.l.b16 %v396
    %v435 = vunpack.c.l.b16 %v397
    %v436 = vunpack.c.l.b16 %v398
    %v437 = vunpack.c.l.b16 %v399
    %v438 = vunpack.c.l.b16 %v400
    %v439 = vunpack.c.l.b16 %v401
    %v440 = vpack.c.b16 %v425, %v424
    %v441 = vpack.c.b16 %v427, %v426
    %v442 = vpack.c.b16 %v429, %v428
    %v443 = vpack.c.b16 %v431, %v430
    %v444 = vpack.c.b16 %v433, %v432
    %v445 = vpack.c.b16 %v435, %v434
    %v446 = vpack.c.b16 %v437, %v436
    %v447 = vpack.c.b16 %v439, %v438
    %456 = vmatprep.subr.bf16.mxu0 0
    %457 = vmatpush1.bf16.msra.mxu0 %v447
    %458 = vmatprep.subr.bf16.mxu0 0
    %459 = vmatpush1.bf16.msra.mxu0 %v446
    %460 = vmatprep.subr.bf16.mxu0 0
    %461 = vmatpush1.bf16.msra.mxu0 %v445
    %462 = vmatprep.subr.bf16.mxu0 0
    %463 = vmatpush1.bf16.msra.mxu0 %v444
    %464 = vmatprep.subr.bf16.mxu0 0
    %465 = vmatpush1.bf16.msra.mxu0 %v443
    %466 = vmatprep.subr.bf16.mxu0 0
    %467 = vmatpush1.bf16.msra.mxu0 %v442
    %468 = vmatprep.subr.bf16.mxu0 0
    %469 = vmatpush1.bf16.msra.mxu0 %v441
    %470 = vmatprep.subr.bf16.mxu0 0
    %471 = vmatpush1.bf16.msra.mxu0 %v440
    %472 = vmatprep.subr.bf16.mxu0 0
    %473 = vmatpush2.bf16.msra.mxu0 0
    %474 = vmatprep.subr.bf16.mxu0 0
    %475 = vmatpush2.bf16.msra.mxu0 0
    %476 = vmatprep.subr.bf16.mxu0 0
    %477 = vmatpush2.bf16.msra.mxu0 0
    %478 = vmatprep.subr.bf16.mxu0 0
    %479 = vmatpush2.bf16.msra.mxu0 0
    %480 = vmatprep.subr.bf16.mxu0 0
    %481 = vmatpush2.bf16.msra.mxu0 0
    %482 = vmatprep.subr.bf16.mxu0 0
    %483 = vmatpush2.bf16.msra.mxu0 0
    %484 = vmatprep.subr.bf16.mxu0 0
    %485 = vmatpush2.bf16.msra.mxu0 0
    %486 = vmatprep.subr.bf16.mxu0 0
    %487 = vmatpush2.bf16.msra.mxu0 0
    %488 = vmatprep.mubr.bf16.mxu0 0
    %489 = vmatmul.mubr.bf16.gmra.mxu0 %v385
    %v490 = vpop.f32.mrf.mxu0
    %v491 = vadd.f32 %v406, %v490
    %v492 = vpop.f32.mrf.mxu0
    %v493 = vpop.f32.mrf.mxu0
    %v494 = vpop.f32.mrf.mxu0
    %495 = vdwg.mxu0
    %v496 = vmax.f32 %v491, 0.0
    %v497 = vpack.c.bf16 %v496, %v496
    %v498 = vld [vmem:[#allocation9] sm:$0xf]
    %v499 = vld [vmem:[#allocation9 + $0x4] sm:$0xf]
    %v500 = vld [vmem:[#allocation9 + $0x8] sm:$0xf]
    %v501 = vld [vmem:[#allocation9 + $0xc] sm:$0xf]
    %v502 = vld [vmem:[#allocation9 + $0x10] sm:$0xf]
    %v503 = vld [vmem:[#allocation9 + $0x14] sm:$0xf]
    %v504 = vld [vmem:[#allocation9 + $0x18] sm:$0xf]
    %v505 = vld [vmem:[#allocation9 + $0x1c] sm:$0xf]
    %v506 = vld [vmem:[#allocation9 + $0x20] sm:$0xf]
    %v507 = vld [vmem:[#allocation9 + $0x24] sm:$0xf]
    %v508 = vld [vmem:[#allocation9 + $0x28] sm:$0xf]
    %v509 = vld [vmem:[#allocation9 + $0x2c] sm:$0xf]
    %v510 = vld [vmem:[#allocation9 + $0x30] sm:$0xf]
    %v511 = vld [vmem:[#allocation9 + $0x34] sm:$0xf]
    %v512 = vld [vmem:[#allocation9 + $0x38] sm:$0xf]
    %v513 = vld [vmem:[#allocation9 + $0x3c] sm:$0xf]
    %v515 = vlaneseq
    %v516 = vshrl.u32 %v515, 7
    %v517 = vsub.s32 0, %v516
    %v518 = vrot.slane %v271, %v517
    %v536 = vunpack.c.l.b16 %v498
    %v537 = vunpack.c.l.b16 %v499
    %v538 = vunpack.c.l.b16 %v500
    %v539 = vunpack.c.l.b16 %v501
    %v540 = vunpack.c.l.b16 %v502
    %v541 = vunpack.c.l.b16 %v503
    %v542 = vunpack.c.l.b16 %v504
    %v543 = vunpack.c.l.b16 %v505
    %v544 = vunpack.c.l.b16 %v506
    %v545 = vunpack.c.l.b16 %v507
    %v546 = vunpack.c.l.b16 %v508
    %v547 = vunpack.c.l.b16 %v509
    %v548 = vunpack.c.l.b16 %v510
    %v549 = vunpack.c.l.b16 %v511
    %v550 = vunpack.c.l.b16 %v512
    %v551 = vunpack.c.l.b16 %v513
    %v552 = vpack.c.b16 %v537, %v536
    %v553 = vpack.c.b16 %v539, %v538
    %v554 = vpack.c.b16 %v541, %v540
    %v555 = vpack.c.b16 %v543, %v542
    %v556 = vpack.c.b16 %v545, %v544
    %v557 = vpack.c.b16 %v547, %v546
    %v558 = vpack.c.b16 %v549, %v548
    %v559 = vpack.c.b16 %v551, %v550
    %568 = vmatprep.subr.bf16.mxu0 0
    %569 = vmatpush1.bf16.msra.mxu0 %v559
    %570 = vmatprep.subr.bf16.mxu0 0
    %571 = vmatpush1.bf16.msra.mxu0 %v558
    %572 = vmatprep.subr.bf16.mxu0 0
    %573 = vmatpush1.bf16.msra.mxu0 %v557
    %574 = vmatprep.subr.bf16.mxu0 0
    %575 = vmatpush1.bf16.msra.mxu0 %v556
    %576 = vmatprep.subr.bf16.mxu0 0
    %577 = vmatpush1.bf16.msra.mxu0 %v555
    %578 = vmatprep.subr.bf16.mxu0 0
    %579 = vmatpush1.bf16.msra.mxu0 %v554
    %580 = vmatprep.subr.bf16.mxu0 0
    %581 = vmatpush1.bf16.msra.mxu0 %v553
    %582 = vmatprep.subr.bf16.mxu0 0
    %583 = vmatpush1.bf16.msra.mxu0 %v552
    %584 = vmatprep.subr.bf16.mxu0 0
    %585 = vmatpush2.bf16.msra.mxu0 0
    %586 = vmatprep.subr.bf16.mxu0 0
    %587 = vmatpush2.bf16.msra.mxu0 0
    %588 = vmatprep.subr.bf16.mxu0 0
    %589 = vmatpush2.bf16.msra.mxu0 0
    %590 = vmatprep.subr.bf16.mxu0 0
    %591 = vmatpush2.bf16.msra.mxu0 0
    %592 = vmatprep.subr.bf16.mxu0 0
    %593 = vmatpush2.bf16.msra.mxu0 0
    %594 = vmatprep.subr.bf16.mxu0 0
    %595 = vmatpush2.bf16.msra.mxu0 0
    %596 = vmatprep.subr.bf16.mxu0 0
    %597 = vmatpush2.bf16.msra.mxu0 0
    %598 = vmatprep.subr.bf16.mxu0 0
    %599 = vmatpush2.bf16.msra.mxu0 0
    %600 = vmatprep.mubr.bf16.mxu0 0
    %601 = vmatmul.mubr.bf16.gmra.mxu0 %v497
    %v602 = vpop.f32.mrf.mxu0
    %v603 = vadd.f32 %v518, %v602
    %v604 = vpop.f32.mrf.mxu0
    %v605 = vpop.f32.mrf.mxu0
    %v606 = vpop.f32.mrf.mxu0
    %607 = vdwg.mxu0
    %v608 = vtanh.pop %v603
    %v609 = vlaneseq
    %v610 = vand.u32 %v609, 127
    %vm611 = vcmp.lt.s32.totalorder %v610, 8
    %v612 = vsel %vm611, %v267, 0.0
    %v613 = vmul.f32 %v272, 1.442695
    %v614 = vpow.pop %v613
    %v616 = vlaneseq
    %v617 = vshrl.u32 %v616, 7
    %v618 = vsub.s32 0, %v617
    %v619 = vrot.slane %v614, %v618
    %v621 = vmul.f32 %v619, %v612
    %v622 = vadd.f32 %v608, %v621
    %623 = vst [vmem:[#allocation11] sm:$0xff] %v622
    %vm624 = vcmask 1040384
    %v625 = vsel %vm624, %v272, 0.0
    %626 = vadd.xlane.f32.xlu0 %v625
    %v627 = vpop.xlane.xlu0 %626
    %v628 = vrot.slane %v627, 4
    %v629 = vadd.f32 %v627, %v628
    %v630 = vrot.slane %v629, 2
    %v631 = vadd.f32 %v629, %v630
    %v632 = vrot.slane %v631, 1
    %v633 = vadd.f32 %v631, %v632
    %s634 = vtos %v633
    %s635 = ssub.f32 0.0, %s634
    %s636 = ssub.f32 %s635, 7.351508
    %v637 = vmul.f32 %v612, %v612
    %638 = vadd.xlane.f32.xlu0 %v637
    %v639 = vpop.xlane.xlu0 %638
    %v640 = vmul.f32 %v639, -0.5
    %v641 = vstv %s636
    %v642 = vadd.f32 %v640, %v641
    %vm643 = vcmask 7168
    %644 = vst.msk [vmem:[%s7] sm:$0xff] %vm643, %v642
    // Predicated region
    $region42: #{tpu_custom_call.1} parent=1 // pred_check
      _
    $region43: #{tpu_custom_call.1} parent=1 // pred_check_branch
      %646 = sbr.rel (0) target = $region45
    $region44: #{tpu_custom_call.1} parent=1 // pred_region
      %s648 = ssub.s32 128, 128
      %649 = vsyncadd [#allocation5], %s648
      %s651 = sshll.u32 [#allocation11], 4
      %s652 = int_to_ptr.vmem [resolvable:$true] %s651
      %654 = dma.vmem_to_hbm [thread:$0]  %s652, 128, %s6, [#allocation5]
    $region45: #{tpu_custom_call.1} parent=1 // pred_fallthru
      _
    // Predicated region
    $region46: #{tpu_custom_call.1} parent=1 // pred_check
      _
    $region47: #{tpu_custom_call.1} parent=1 // pred_check_branch
      %656 = sbr.rel (0) target = $region49
    $region48: #{tpu_custom_call.1} parent=1 // pred_region
      _
    $region49: #{tpu_custom_call.1} parent=1 // pred_fallthru
      _
    // Predicated region
    $region50: #{tpu_custom_call.1} parent=1 // pred_check
      _
    $region51: #{tpu_custom_call.1} parent=1 // pred_check_branch
      %658 = sbr.rel (0) target = $region53
    $region52: #{tpu_custom_call.1} parent=1 // pred_region
      %659 = dma.done [#allocation5], 128
    $region53: #{tpu_custom_call.1} parent=1 // pred_fallthru
      _
    // Predicated region
    $region54: #{tpu_custom_call.1} parent=1 // pred_check
      _
    $region55: #{tpu_custom_call.1} parent=1 // pred_check_branch
      %661 = sbr.rel (0) target = $region57
    $region56: #{tpu_custom_call.1} parent=1 // pred_region
      _
    $region57: #{tpu_custom_call.1} parent=1 // pred_fallthru
      _
    %662 = vsyncpa [#allocation4], 1
    %663 = vsyncpa [#allocation7], 1
    %664 = vsyncpa [#allocation10], 1
    %665 = vsyncpa [#allocation5], 1

// kernel: tpu_custom_call.1
$region0: #{tpu_custom_call.1}
  #allocation0 [shape = 'u32[]', space=smem, size = 0x4, offset = 0x4, fixed_abs, tag = 'smem constant byte address 0x4 - core index']
  #allocation1 [shape = 'u32[144,128]{1,0:T(1,128)}', space=vmem, size = 0x12000, scoped, tag = 'internal scratch']
  %s0 = inlined_call_operand.hbm [shape: f32[8,128], index: 0, kind: input, shape index: {}]
  %s1 = inlined_call_operand.hbm [shape: f32[8,128], index: 1, kind: input, shape index: {}]
  %s2 = inlined_call_operand.hbm [shape: bf16[128,128], index: 2, kind: input, shape index: {}]
  %s3 = inlined_call_operand.hbm [shape: bf16[128,128], index: 3, kind: input, shape index: {}]
  %s4 = inlined_call_operand.hbm [shape: bf16[128,128], index: 4, kind: input, shape index: {}]
  %s5 = inlined_call_operand.vmem [shape: f32[1,512], index: 5, kind: input, shape index: {}]
  %s6 = inlined_call_operand.hbm [shape: f32[8,128], index: 6, kind: output, shape index: {0}]
  %s7 = inlined_call_operand.vmem [shape: f32[8,1], index: 7, kind: output, shape index: {1}]
  %8 = xla_tuple %s6, %s7
  %s9 = sld [smem:[#allocation0]]
  $region62: #{tpu_custom_call.1} parent=0
    _
  %s11 = ssub.s32 1, %s9
  %s12 = scalar_select 0, %s11, %s9
  $region1: #{tpu_custom_call.1} parent=0
    #allocation2 [shape = 'u8[4096]{0}', space=vmem, size = 0x1000, scoped, tag = 'input window, operand 0, single buffered']
    #allocation3 [shape = 's32[1]{0}', space=sflag, size = 0x4, scoped, tag = 'scoped memory for tpu_custom_call.1']
    #allocation4 [shape = 's32[1]{0}', space=sflag, size = 0x4, scoped, tag = 'scoped memory for tpu_custom_call.1']
    #allocation5 [shape = 'u8[4096]{0}', space=vmem, size = 0x1000, scoped, tag = 'input window, operand 1, single buffered']
    #allocation6 [shape = 's32[1]{0}', space=sflag, size = 0x4, scoped, tag = 'scoped memory for tpu_custom_call.1']
    #allocation7 [shape = 'u8[32768]{0}', space=vmem, size = 0x8000, scoped, tag = 'input window, operand 2, single buffered']
    #allocation8 [shape = 'u8[32768]{0}', space=vmem, size = 0x8000, scoped, tag = 'input window, operand 3, single buffered']
    #allocation9 [shape = 's32[1]{0}', space=sflag, size = 0x4, scoped, tag = 'scoped memory for tpu_custom_call.1']
    #allocation10 [shape = 'u8[32768]{0}', space=vmem, size = 0x8000, scoped, tag = 'input window, operand 4, single buffered']
    #allocation11 [shape = 'u8[4096]{0}', space=vmem, size = 0x1000, scoped, tag = 'output window, operand 0, single buffered']
    %13 = vsyncpa [#allocation3], 0
    %14 = vsyncpa [#allocation6], 0
    %15 = vsyncpa [#allocation9], 0
    %16 = vsyncpa [#allocation4], 0
    // Predicated region
    $region2: #{tpu_custom_call.1} parent=1 // pred_check
      _
    $region3: #{tpu_custom_call.1} parent=1 // pred_check_branch
      %18 = sbr.rel (0) target = $region5
    $region4: #{tpu_custom_call.1} parent=1 // pred_region
      %s20 = ssub.s32 128, 128
      %21 = vsyncadd [#allocation3], %s20
      %s23 = sshll.u32 [#allocation2], 4
      %s24 = int_to_ptr.vmem [resolvable:$true] %s23
      %26 = dma.hbm_to_vmem [thread:$0]  %s0, 128, %s24, [#allocation3]
    $region5: #{tpu_custom_call.1} parent=1 // pred_fallthru
      _
    // Predicated region
    $region6: #{tpu_custom_call.1} parent=1 // pred_check
      _
    $region7: #{tpu_custom_call.1} parent=1 // pred_check_branch
      %28 = sbr.rel (0) target = $region9
    $region8: #{tpu_custom_call.1} parent=1 // pred_region
      %s30 = ssub.s32 128, 128
      %31 = vsyncadd [#allocation6], %s30
      %s33 = sshll.u32 [#allocation5], 4
      %s34 = int_to_ptr.vmem [resolvable:$true] %s33
      %36 = dma.hbm_to_vmem [thread:$0]  %s1, 128, %s34, [#allocation6]
    $region9: #{tpu_custom_call.1} parent=1 // pred_fallthru
      _
    // Predicated region
    $region10: #{tpu_custom_call.1} parent=1 // pred_check
      _
    $region11: #{tpu_custom_call.1} parent=1 // pred_check_branch
      %38 = sbr.rel (0) target = $region13
    $region12: #{tpu_custom_call.1} parent=1 // pred_region
      %s40 = ssub.s32 1024, 1024
      %41 = vsyncadd [#allocation6], %s40
      %s42 = sshll.u32 [#allocation7], 4
      %s43 = int_to_ptr.vmem [resolvable:$true] %s42
      %48 = dma.hbm_to_vmem [thread:$0]  %s2, 1024, %s43, [#allocation6], 64, 64, 4
    $region13: #{tpu_custom_call.1} parent=1 // pred_fallthru
      _
    // Predicated region
    $region14: #{tpu_custom_call.1} parent=1 // pred_check
      _
    $region15: #{tpu_custom_call.1} parent=1 // pred_check_branch
      %50 = sbr.rel (0) target = $region17
    $region16: #{tpu_custom_call.1} parent=1 // pred_region
      %s52 = ssub.s32 1024, 1024
      %53 = vsyncadd [#allocation9], %s52
      %s54 = sshll.u32 [#allocation8], 4
      %s55 = int_to_ptr.vmem [resolvable:$true] %s54
      %60 = dma.hbm_to_vmem [thread:$0]  %s3, 1024, %s55, [#allocation9], 64, 64, 4
    $region17: #{tpu_custom_call.1} parent=1 // pred_fallthru
      _
    // Predicated region
    $region18: #{tpu_custom_call.1} parent=1 // pred_check
      _
    $region19: #{tpu_custom_call.1} parent=1 // pred_check_branch
      %62 = sbr.rel (0) target = $region21
    $region20: #{tpu_custom_call.1} parent=1 // pred_region
      %s64 = ssub.s32 1024, 1024
      %65 = vsyncadd [#allocation9], %s64
      %s66 = sshll.u32 [#allocation10], 4
      %s67 = int_to_ptr.vmem [resolvable:$true] %s66
      %72 = dma.hbm_to_vmem [thread:$0]  %s4, 1024, %s67, [#allocation9], 64, 64, 4
    $region21: #{tpu_custom_call.1} parent=1 // pred_fallthru
      _
    // Predicated region
    $region22: #{tpu_custom_call.1} parent=1 // pred_check
      _
    $region23: #{tpu_custom_call.1} parent=1 // pred_check_branch
      %74 = sbr.rel (0) target = $region25
    $region24: #{tpu_custom_call.1} parent=1 // pred_region
      _
    $region25: #{tpu_custom_call.1} parent=1 // pred_fallthru
      _
    // Predicated region
    $region26: #{tpu_custom_call.1} parent=1 // pred_check
      _
    $region27: #{tpu_custom_call.1} parent=1 // pred_check_branch
      %76 = sbr.rel (0) target = $region29
    $region28: #{tpu_custom_call.1} parent=1 // pred_region
      %77 = dma.done [#allocation3], 128
    $region29: #{tpu_custom_call.1} parent=1 // pred_fallthru
      _
    // Predicated region
    $region30: #{tpu_custom_call.1} parent=1 // pred_check
      _
    $region31: #{tpu_custom_call.1} parent=1 // pred_check_branch
      %79 = sbr.rel (0) target = $region33
    $region32: #{tpu_custom_call.1} parent=1 // pred_region
      %80 = dma.done [#allocation6], 128
    $region33: #{tpu_custom_call.1} parent=1 // pred_fallthru
      _
    // Predicated region
    $region34: #{tpu_custom_call.1} parent=1 // pred_check
      _
    $region35: #{tpu_custom_call.1} parent=1 // pred_check_branch
      %82 = sbr.rel (0) target = $region37
    $region36: #{tpu_custom_call.1} parent=1 // pred_region
      %83 = dma.done [#allocation6], 1024
    $region37: #{tpu_custom_call.1} parent=1 // pred_fallthru
      _
    // Predicated region
    $region38: #{tpu_custom_call.1} parent=1 // pred_check
      _
    $region39: #{tpu_custom_call.1} parent=1 // pred_check_branch
      %85 = sbr.rel (0) target = $region41
    $region40: #{tpu_custom_call.1} parent=1 // pred_region
      %86 = dma.done [#allocation9], 1024
    $region41: #{tpu_custom_call.1} parent=1 // pred_fallthru
      _
    // Predicated region
    $region42: #{tpu_custom_call.1} parent=1 // pred_check
      _
    $region43: #{tpu_custom_call.1} parent=1 // pred_check_branch
      %88 = sbr.rel (0) target = $region45
    $region44: #{tpu_custom_call.1} parent=1 // pred_region
      %89 = dma.done [#allocation9], 1024
    $region45: #{tpu_custom_call.1} parent=1 // pred_fallthru
      _
    %v91 = vld [vmem:[#allocation5] sm:$0xff]
    %v92 = vld [vmem:[#allocation2] sm:$0xff]
    %v93 = vld [vmem:[%s5] sm:$0x1]
    %v94 = vld [vmem:[%s5 + $0x1] sm:$0x1]
    %v95 = vld [vmem:[%s5 + $0x2] sm:$0x1]
    %v96 = vld [vmem:[%s5 + $0x3] sm:$0x1]
    %v97 = vpack.c.bf16 %v92, %v92
    %v98 = vld [vmem:[#allocation7] sm:$0xf]
    %v99 = vld [vmem:[#allocation7 + $0x4] sm:$0xf]
    %v100 = vld [vmem:[#allocation7 + $0x8] sm:$0xf]
    %v101 = vld [vmem:[#allocation7 + $0xc] sm:$0xf]
    %v102 = vld [vmem:[#allocation7 + $0x10] sm:$0xf]
    %v103 = vld [vmem:[#allocation7 + $0x14] sm:$0xf]
    %v104 = vld [vmem:[#allocation7 + $0x18] sm:$0xf]
    %v105 = vld [vmem:[#allocation7 + $0x1c] sm:$0xf]
    %v106 = vld [vmem:[#allocation7 + $0x20] sm:$0xf]
    %v107 = vld [vmem:[#allocation7 + $0x24] sm:$0xf]
    %v108 = vld [vmem:[#allocation7 + $0x28] sm:$0xf]
    %v109 = vld [vmem:[#allocation7 + $0x2c] sm:$0xf]
    %v110 = vld [vmem:[#allocation7 + $0x30] sm:$0xf]
    %v111 = vld [vmem:[#allocation7 + $0x34] sm:$0xf]
    %v112 = vld [vmem:[#allocation7 + $0x38] sm:$0xf]
    %v113 = vld [vmem:[#allocation7 + $0x3c] sm:$0xf]
    %v115 = vlaneseq
    %v116 = vshrl.u32 %v115, 7
    %v117 = vsub.s32 0, %v116
    %v118 = vrot.slane %v93, %v117
    %v136 = vunpack.c.l.b16 %v98
    %v137 = vunpack.c.l.b16 %v99
    %v138 = vunpack.c.l.b16 %v100
    %v139 = vunpack.c.l.b16 %v101
    %v140 = vunpack.c.l.b16 %v102
    %v141 = vunpack.c.l.b16 %v103
    %v142 = vunpack.c.l.b16 %v104
    %v143 = vunpack.c.l.b16 %v105
    %v144 = vunpack.c.l.b16 %v106
    %v145 = vunpack.c.l.b16 %v107
    %v146 = vunpack.c.l.b16 %v108
    %v147 = vunpack.c.l.b16 %v109
    %v148 = vunpack.c.l.b16 %v110
    %v149 = vunpack.c.l.b16 %v111
    %v150 = vunpack.c.l.b16 %v112
    %v151 = vunpack.c.l.b16 %v113
    %v152 = vpack.c.b16 %v137, %v136
    %v153 = vpack.c.b16 %v139, %v138
    %v154 = vpack.c.b16 %v141, %v140
    %v155 = vpack.c.b16 %v143, %v142
    %v156 = vpack.c.b16 %v145, %v144
    %v157 = vpack.c.b16 %v147, %v146
    %v158 = vpack.c.b16 %v149, %v148
    %v159 = vpack.c.b16 %v151, %v150
    %168 = vmatprep.subr.bf16.mxu0 0
    %169 = vmatpush1.bf16.msra.mxu0 %v159
    %170 = vmatprep.subr.bf16.mxu0 0
    %171 = vmatpush1.bf16.msra.mxu0 %v158
    %172 = vmatprep.subr.bf16.mxu0 0
    %173 = vmatpush1.bf16.msra.mxu0 %v157
    %174 = vmatprep.subr.bf16.mxu0 0
    %175 = vmatpush1.bf16.msra.mxu0 %v156
    %176 = vmatprep.subr.bf16.mxu0 0
    %177 = vmatpush1.bf16.msra.mxu0 %v155
    %178 = vmatprep.subr.bf16.mxu0 0
    %179 = vmatpush1.bf16.msra.mxu0 %v154
    %180 = vmatprep.subr.bf16.mxu0 0
    %181 = vmatpush1.bf16.msra.mxu0 %v153
    %182 = vmatprep.subr.bf16.mxu0 0
    %183 = vmatpush1.bf16.msra.mxu0 %v152
    %184 = vmatprep.subr.bf16.mxu0 0
    %185 = vmatpush2.bf16.msra.mxu0 0
    %186 = vmatprep.subr.bf16.mxu0 0
    %187 = vmatpush2.bf16.msra.mxu0 0
    %188 = vmatprep.subr.bf16.mxu0 0
    %189 = vmatpush2.bf16.msra.mxu0 0
    %190 = vmatprep.subr.bf16.mxu0 0
    %191 = vmatpush2.bf16.msra.mxu0 0
    %192 = vmatprep.subr.bf16.mxu0 0
    %193 = vmatpush2.bf16.msra.mxu0 0
    %194 = vmatprep.subr.bf16.mxu0 0
    %195 = vmatpush2.bf16.msra.mxu0 0
    %196 = vmatprep.subr.bf16.mxu0 0
    %197 = vmatpush2.bf16.msra.mxu0 0
    %198 = vmatprep.subr.bf16.mxu0 0
    %199 = vmatpush2.bf16.msra.mxu0 0
    %200 = vmatprep.mubr.bf16.mxu0 0
    %201 = vmatmul.mubr.bf16.gmra.mxu0 %v97
    %v202 = vpop.f32.mrf.mxu0
    %v203 = vadd.f32 %v118, %v202
    %v204 = vpop.f32.mrf.mxu0
    %v205 = vpop.f32.mrf.mxu0
    %v206 = vpop.f32.mrf.mxu0
    %207 = vdwg.mxu0
    %v208 = vmax.f32 %v203, 0.0
    %v209 = vpack.c.bf16 %v208, %v208
    %v210 = vld [vmem:[#allocation8] sm:$0xf]
    %v211 = vld [vmem:[#allocation8 + $0x4] sm:$0xf]
    %v212 = vld [vmem:[#allocation8 + $0x8] sm:$0xf]
    %v213 = vld [vmem:[#allocation8 + $0xc] sm:$0xf]
    %v214 = vld [vmem:[#allocation8 + $0x10] sm:$0xf]
    %v215 = vld [vmem:[#allocation8 + $0x14] sm:$0xf]
    %v216 = vld [vmem:[#allocation8 + $0x18] sm:$0xf]
    %v217 = vld [vmem:[#allocation8 + $0x1c] sm:$0xf]
    %v218 = vld [vmem:[#allocation8 + $0x20] sm:$0xf]
    %v219 = vld [vmem:[#allocation8 + $0x24] sm:$0xf]
    %v220 = vld [vmem:[#allocation8 + $0x28] sm:$0xf]
    %v221 = vld [vmem:[#allocation8 + $0x2c] sm:$0xf]
    %v222 = vld [vmem:[#allocation8 + $0x30] sm:$0xf]
    %v223 = vld [vmem:[#allocation8 + $0x34] sm:$0xf]
    %v224 = vld [vmem:[#allocation8 + $0x38] sm:$0xf]
    %v225 = vld [vmem:[#allocation8 + $0x3c] sm:$0xf]
    %v227 = vlaneseq
    %v228 = vshrl.u32 %v227, 7
    %v229 = vsub.s32 0, %v228
    %v230 = vrot.slane %v94, %v229
    %v248 = vunpack.c.l.b16 %v210
    %v249 = vunpack.c.l.b16 %v211
    %v250 = vunpack.c.l.b16 %v212
    %v251 = vunpack.c.l.b16 %v213
    %v252 = vunpack.c.l.b16 %v214
    %v253 = vunpack.c.l.b16 %v215
    %v254 = vunpack.c.l.b16 %v216
    %v255 = vunpack.c.l.b16 %v217
    %v256 = vunpack.c.l.b16 %v218
    %v257 = vunpack.c.l.b16 %v219
    %v258 = vunpack.c.l.b16 %v220
    %v259 = vunpack.c.l.b16 %v221
    %v260 = vunpack.c.l.b16 %v222
    %v261 = vunpack.c.l.b16 %v223
    %v262 = vunpack.c.l.b16 %v224
    %v263 = vunpack.c.l.b16 %v225
    %v264 = vpack.c.b16 %v249, %v248
    %v265 = vpack.c.b16 %v251, %v250
    %v266 = vpack.c.b16 %v253, %v252
    %v267 = vpack.c.b16 %v255, %v254
    %v268 = vpack.c.b16 %v257, %v256
    %v269 = vpack.c.b16 %v259, %v258
    %v270 = vpack.c.b16 %v261, %v260
    %v271 = vpack.c.b16 %v263, %v262
    %280 = vmatprep.subr.bf16.mxu0 0
    %281 = vmatpush1.bf16.msra.mxu0 %v271
    %282 = vmatprep.subr.bf16.mxu0 0
    %283 = vmatpush1.bf16.msra.mxu0 %v270
    %284 = vmatprep.subr.bf16.mxu0 0
    %285 = vmatpush1.bf16.msra.mxu0 %v269
    %286 = vmatprep.subr.bf16.mxu0 0
    %287 = vmatpush1.bf16.msra.mxu0 %v268
    %288 = vmatprep.subr.bf16.mxu0 0
    %289 = vmatpush1.bf16.msra.mxu0 %v267
    %290 = vmatprep.subr.bf16.mxu0 0
    %291 = vmatpush1.bf16.msra.mxu0 %v266
    %292 = vmatprep.subr.bf16.mxu0 0
    %293 = vmatpush1.bf16.msra.mxu0 %v265
    %294 = vmatprep.subr.bf16.mxu0 0
    %295 = vmatpush1.bf16.msra.mxu0 %v264
    %296 = vmatprep.subr.bf16.mxu0 0
    %297 = vmatpush2.bf16.msra.mxu0 0
    %298 = vmatprep.subr.bf16.mxu0 0
    %299 = vmatpush2.bf16.msra.mxu0 0
    %300 = vmatprep.subr.bf16.mxu0 0
    %301 = vmatpush2.bf16.msra.mxu0 0
    %302 = vmatprep.subr.bf16.mxu0 0
    %303 = vmatpush2.bf16.msra.mxu0 0
    %304 = vmatprep.subr.bf16.mxu0 0
    %305 = vmatpush2.bf16.msra.mxu0 0
    %306 = vmatprep.subr.bf16.mxu0 0
    %307 = vmatpush2.bf16.msra.mxu0 0
    %308 = vmatprep.subr.bf16.mxu0 0
    %309 = vmatpush2.bf16.msra.mxu0 0
    %310 = vmatprep.subr.bf16.mxu0 0
    %311 = vmatpush2.bf16.msra.mxu0 0
    %312 = vmatprep.mubr.bf16.mxu0 0
    %313 = vmatmul.mubr.bf16.gmra.mxu0 %v209
    %v314 = vpop.f32.mrf.mxu0
    %v315 = vadd.f32 %v230, %v314
    %v316 = vpop.f32.mrf.mxu0
    %v317 = vpop.f32.mrf.mxu0
    %v318 = vpop.f32.mrf.mxu0
    %319 = vdwg.mxu0
    %v320 = vmax.f32 %v315, 0.0
    %v321 = vpack.c.bf16 %v320, %v320
    %v322 = vld [vmem:[#allocation10] sm:$0xf]
    %v323 = vld [vmem:[#allocation10 + $0x4] sm:$0xf]
    %v324 = vld [vmem:[#allocation10 + $0x8] sm:$0xf]
    %v325 = vld [vmem:[#allocation10 + $0xc] sm:$0xf]
    %v326 = vld [vmem:[#allocation10 + $0x10] sm:$0xf]
    %v327 = vld [vmem:[#allocation10 + $0x14] sm:$0xf]
    %v328 = vld [vmem:[#allocation10 + $0x18] sm:$0xf]
    %v329 = vld [vmem:[#allocation10 + $0x1c] sm:$0xf]
    %v330 = vld [vmem:[#allocation10 + $0x20] sm:$0xf]
    %v331 = vld [vmem:[#allocation10 + $0x24] sm:$0xf]
    %v332 = vld [vmem:[#allocation10 + $0x28] sm:$0xf]
    %v333 = vld [vmem:[#allocation10 + $0x2c] sm:$0xf]
    %v334 = vld [vmem:[#allocation10 + $0x30] sm:$0xf]
    %v335 = vld [vmem:[#allocation10 + $0x34] sm:$0xf]
    %v336 = vld [vmem:[#allocation10 + $0x38] sm:$0xf]
    %v337 = vld [vmem:[#allocation10 + $0x3c] sm:$0xf]
    %v339 = vlaneseq
    %v340 = vshrl.u32 %v339, 7
    %v341 = vsub.s32 0, %v340
    %v342 = vrot.slane %v95, %v341
    %v360 = vunpack.c.l.b16 %v322
    %v361 = vunpack.c.l.b16 %v323
    %v362 = vunpack.c.l.b16 %v324
    %v363 = vunpack.c.l.b16 %v325
    %v364 = vunpack.c.l.b16 %v326
    %v365 = vunpack.c.l.b16 %v327
    %v366 = vunpack.c.l.b16 %v328
    %v367 = vunpack.c.l.b16 %v329
    %v368 = vunpack.c.l.b16 %v330
    %v369 = vunpack.c.l.b16 %v331
    %v370 = vunpack.c.l.b16 %v332
    %v371 = vunpack.c.l.b16 %v333
    %v372 = vunpack.c.l.b16 %v334
    %v373 = vunpack.c.l.b16 %v335
    %v374 = vunpack.c.l.b16 %v336
    %v375 = vunpack.c.l.b16 %v337
    %v376 = vpack.c.b16 %v361, %v360
    %v377 = vpack.c.b16 %v363, %v362
    %v378 = vpack.c.b16 %v365, %v364
    %v379 = vpack.c.b16 %v367, %v366
    %v380 = vpack.c.b16 %v369, %v368
    %v381 = vpack.c.b16 %v371, %v370
    %v382 = vpack.c.b16 %v373, %v372
    %v383 = vpack.c.b16 %v375, %v374
    %392 = vmatprep.subr.bf16.mxu0 0
    %393 = vmatpush1.bf16.msra.mxu0 %v383
    %394 = vmatprep.subr.bf16.mxu0 0
    %395 = vmatpush1.bf16.msra.mxu0 %v382
    %396 = vmatprep.subr.bf16.mxu0 0
    %397 = vmatpush1.bf16.msra.mxu0 %v381
    %398 = vmatprep.subr.bf16.mxu0 0
    %399 = vmatpush1.bf16.msra.mxu0 %v380
    %400 = vmatprep.subr.bf16.mxu0 0
    %401 = vmatpush1.bf16.msra.mxu0 %v379
    %402 = vmatprep.subr.bf16.mxu0 0
    %403 = vmatpush1.bf16.msra.mxu0 %v378
    %404 = vmatprep.subr.bf16.mxu0 0
    %405 = vmatpush1.bf16.msra.mxu0 %v377
    %406 = vmatprep.subr.bf16.mxu0 0
    %407 = vmatpush1.bf16.msra.mxu0 %v376
    %408 = vmatprep.subr.bf16.mxu0 0
    %409 = vmatpush2.bf16.msra.mxu0 0
    %410 = vmatprep.subr.bf16.mxu0 0
    %411 = vmatpush2.bf16.msra.mxu0 0
    %412 = vmatprep.subr.bf16.mxu0 0
    %413 = vmatpush2.bf16.msra.mxu0 0
    %414 = vmatprep.subr.bf16.mxu0 0
    %415 = vmatpush2.bf16.msra.mxu0 0
    %416 = vmatprep.subr.bf16.mxu0 0
    %417 = vmatpush2.bf16.msra.mxu0 0
    %418 = vmatprep.subr.bf16.mxu0 0
    %419 = vmatpush2.bf16.msra.mxu0 0
    %420 = vmatprep.subr.bf16.mxu0 0
    %421 = vmatpush2.bf16.msra.mxu0 0
    %422 = vmatprep.subr.bf16.mxu0 0
    %423 = vmatpush2.bf16.msra.mxu0 0
    %424 = vmatprep.mubr.bf16.mxu0 0
    %425 = vmatmul.mubr.bf16.gmra.mxu0 %v321
    %v426 = vpop.f32.mrf.mxu0
    %v427 = vadd.f32 %v342, %v426
    %v428 = vpop.f32.mrf.mxu0
    %v429 = vpop.f32.mrf.mxu0
    %v430 = vpop.f32.mrf.mxu0
    %431 = vdwg.mxu0
    %v432 = vtanh.pop %v427
    %v433 = vlaneseq
    %v434 = vand.u32 %v433, 127
    %vm435 = vcmp.lt.s32.totalorder %v434, 8
    %v436 = vsel %vm435, %v91, 0.0
    %v437 = vmul.f32 %v96, 1.442695
    %v438 = vpow.pop %v437
    %v440 = vlaneseq
    %v441 = vshrl.u32 %v440, 7
    %v442 = vsub.s32 0, %v441
    %v443 = vrot.slane %v438, %v442
    %v445 = vmul.f32 %v443, %v436
    %v446 = vadd.f32 %v432, %v445
    %447 = vst [vmem:[#allocation11] sm:$0xff] %v446
    %vm448 = vcmask 1040384
    %v449 = vsel %vm448, %v96, 0.0
    %450 = vadd.xlane.f32.xlu0 %v449
    %v451 = vpop.xlane.xlu0 %450
    %v452 = vrot.slane %v451, 4
    %v453 = vadd.f32 %v451, %v452
    %v454 = vrot.slane %v453, 2
    %v455 = vadd.f32 %v453, %v454
    %v456 = vrot.slane %v455, 1
    %v457 = vadd.f32 %v455, %v456
    %s458 = vtos %v457
    %s459 = ssub.f32 0.0, %s458
    %s460 = ssub.f32 %s459, 7.351508
    %v461 = vmul.f32 %v436, %v436
    %462 = vadd.xlane.f32.xlu0 %v461
    %v463 = vpop.xlane.xlu0 %462
    %v464 = vmul.f32 %v463, -0.5
    %v465 = vstv %s460
    %v466 = vadd.f32 %v464, %v465
    %vm467 = vcmask 7168
    %468 = vst.msk [vmem:[%s7] sm:$0xff] %vm467, %v466
    // Predicated region
    $region46: #{tpu_custom_call.1} parent=1 // pred_check
      _
    $region47: #{tpu_custom_call.1} parent=1 // pred_check_branch
      %470 = sbr.rel (0) target = $region49
    $region48: #{tpu_custom_call.1} parent=1 // pred_region
      %s472 = ssub.s32 128, 128
      %473 = vsyncadd [#allocation4], %s472
      %s475 = sshll.u32 [#allocation11], 4
      %s476 = int_to_ptr.vmem [resolvable:$true] %s475
      %478 = dma.vmem_to_hbm [thread:$0]  %s476, 128, %s6, [#allocation4]
    $region49: #{tpu_custom_call.1} parent=1 // pred_fallthru
      _
    // Predicated region
    $region50: #{tpu_custom_call.1} parent=1 // pred_check
      _
    $region51: #{tpu_custom_call.1} parent=1 // pred_check_branch
      %480 = sbr.rel (0) target = $region53
    $region52: #{tpu_custom_call.1} parent=1 // pred_region
      _
    $region53: #{tpu_custom_call.1} parent=1 // pred_fallthru
      _
    // Predicated region
    $region54: #{tpu_custom_call.1} parent=1 // pred_check
      _
    $region55: #{tpu_custom_call.1} parent=1 // pred_check_branch
      %482 = sbr.rel (0) target = $region57
    $region56: #{tpu_custom_call.1} parent=1 // pred_region
      %483 = dma.done [#allocation4], 128
    $region57: #{tpu_custom_call.1} parent=1 // pred_fallthru
      _
    // Predicated region
    $region58: #{tpu_custom_call.1} parent=1 // pred_check
      _
    $region59: #{tpu_custom_call.1} parent=1 // pred_check_branch
      %485 = sbr.rel (0) target = $region61
    $region60: #{tpu_custom_call.1} parent=1 // pred_region
      _
    $region61: #{tpu_custom_call.1} parent=1 // pred_fallthru
      _
    %486 = vsyncpa [#allocation3], 1
    %487 = vsyncpa [#allocation6], 1
    %488 = vsyncpa [#allocation9], 1
    %489 = vsyncpa [#allocation4], 1

</llo_original>
